<compile_context>
chip_gen: v5e
topology: v5e:2x2
jax: 0.10.0
libtpu: 0.0.40
codegen_flags: <defaults>
</compile_context>

<pallas_src>
import math
import functools

import jax
import jax.numpy as jnp
from jax import lax
from jax.experimental import pallas as pl
from jax.experimental.pallas import tpu as pltpu


def encoder_layer_kernel(x_ref, mask_ref,
                         wqkv_ref, bqkv_ref, wo_ref, bo_ref,
                         ln1_g_ref, ln1_b_ref,
                         w1_ref, b1_ref, w2_ref, b2_ref,
                         ln2_g_ref, ln2_b_ref,
                         out_ref, *attn_refs,
                         batch, seq, n_heads, inv_scale, return_attn):
    """Single grid step over the whole (B*S, D) problem (batch folded into M)."""
    D = x_ref.shape[-1]
    dh = D // n_heads
    inv_d = 1.0 / D

    x = x_ref[...]                                 # (B*S, D) f32 residual stream

    # Key-padding mask (B, 1, S): loaded & converted once, reused for all heads.
    key_masked = mask_ref[...] != 0                # bool, True => masked key

    def layer_norm(h, g_ref, b_ref):
        # Two-pass (centered) statistics: robust to large means.
        mean = jnp.sum(h, axis=-1, keepdims=True) * inv_d
        c = h - mean
        var = jnp.sum(c * c, axis=-1, keepdims=True) * inv_d
        return c * lax.rsqrt(var + 1e-5) * g_ref[...] + b_ref[...]

    # ---- fused QKV projection: one lane-dense (B*S, D) @ (D, 3D) bf16 matmul --
    qkv = jnp.dot(x.astype(jnp.bfloat16), wqkv_ref[...],
                  preferred_element_type=jnp.float32) + bqkv_ref[...]
    qkv3 = qkv.reshape(batch, seq, 3 * D)          # cheap leading-dim split
    qkv_bf = qkv3.astype(jnp.bfloat16)             # cast once for all MXU uses

    # ---- multi-head self-attention --------------------------------------------
    res = jnp.zeros(x.shape, jnp.float32)
    for h in range(n_heads):                       # static, small head count
        qh = qkv_bf[:, :, h * dh:(h + 1) * dh]                       # (B, S, dh)
        kh = qkv_bf[:, :, D + h * dh:D + (h + 1) * dh]
        vh = qkv_bf[:, :, 2 * D + h * dh:2 * D + (h + 1) * dh]

        # Batched contraction over dh; no kh.T / transposed copy materialized.
        scores = jnp.einsum('bqd,bkd->bqk', qh, kh,
                            preferred_element_type=jnp.float32) * inv_scale
        scores = jnp.where(key_masked, -1e10, scores)                # (B, S, S)

        smax = jnp.max(scores, axis=-1, keepdims=True)
        e = jnp.exp(scores - smax)
        w = e * pl.reciprocal(jnp.sum(e, axis=-1, keepdims=True), approx=True)
        if return_attn:
            attn_refs[0][h] = w                    # one contiguous (B,S,S) slab

        ctx = jnp.einsum('bqk,bkd->bqd', w.astype(jnp.bfloat16), vh,
                         preferred_element_type=jnp.float32)         # (B, S, dh)
        # Output projection accumulated per head (folds the head concat away).
        res = res + jnp.dot(ctx.reshape(batch * seq, dh).astype(jnp.bfloat16),
                            wo_ref[h], preferred_element_type=jnp.float32)
    res = res + bo_ref[...]

    # residual + LayerNorm 1 (dropout = identity in eval mode)
    y = layer_norm(x + res, ln1_g_ref, ln1_b_ref)

    # ---- feed-forward: Linear -> ReLU -> Linear + residual + LayerNorm 2 ------
    ff = jnp.maximum(
        jnp.dot(y.astype(jnp.bfloat16), w1_ref[...],
                preferred_element_type=jnp.float32) + b1_ref[...], 0.0)
    ff = jnp.dot(ff.astype(jnp.bfloat16), w2_ref[...],
                 preferred_element_type=jnp.float32) + b2_ref[...]

    out_ref[...] = layer_norm(y + ff, ln2_g_ref, ln2_b_ref)


def encoder_layer(x, key_mask_i32, params, n_heads, *, return_attn=True):
    """x: (B, S, D) f32.  key_mask_i32: (B, 1, S) int32 (nonzero => masked key)."""
    B, S, D = x.shape
    dh = D // n_heads
    d_ff = params['w1'].shape[1]
    inv_scale = 1.0 / math.sqrt(D / n_heads)
    bf16 = jnp.bfloat16

    # Fused / head-split bf16 MXU weights, built once in the wrapper.
    w_qkv = jnp.concatenate([params['wq'], params['wk'], params['wv']],
                            axis=1).astype(bf16)                     # (D, 3D)
    b_qkv = jnp.concatenate([params['bq'], params['bk'], params['bv']], axis=1)
    wo3 = params['wo'].reshape(n_heads, dh, D).astype(bf16)          # (H, dh, D)
    w1 = params['w1'].astype(bf16)
    w2 = params['w2'].astype(bf16)

    x2d = x.reshape(B * S, D)                      # fold batch into the M dim

    kern = functools.partial(encoder_layer_kernel,
                             batch=B, seq=S, n_heads=n_heads,
                             inv_scale=inv_scale, return_attn=return_attn)

    def full(shape):
        return pl.BlockSpec(shape, lambda i, _n=len(shape): (0,) * _n)

    in_specs = [
        full((B * S, D)),                          # x (M-folded residual stream)
        full((B, 1, S)),                           # key-padding mask
        full((D, 3 * D)), full((1, 3 * D)),        # fused W_qkv (bf16), b_qkv
        full((n_heads, dh, D)), full((1, D)),      # wo (head-split rows), bo
        full((1, D)), full((1, D)),                # ln1 gamma, beta
        full((D, d_ff)), full((1, d_ff)),          # w1, b1
        full((d_ff, D)), full((1, D)),             # w2, b2
        full((1, D)), full((1, D)),                # ln2 gamma, beta
    ]
    out_specs = [full((B * S, D))]
    out_shape = [jax.ShapeDtypeStruct((B * S, D), jnp.float32)]
    if return_attn:
        out_specs.append(full((n_heads, B, S, S)))
        out_shape.append(jax.ShapeDtypeStruct((n_heads, B, S, S), jnp.float32))

    outs = pl.pallas_call(
        kern,
        grid=(1,),
        in_specs=in_specs,
        out_specs=tuple(out_specs),
        out_shape=tuple(out_shape),
        compiler_params=pltpu.CompilerParams(
            dimension_semantics=("arbitrary",),
            vmem_limit_bytes=48 * 1024 * 1024),
    )(x2d, key_mask_i32,
      w_qkv, b_qkv, wo3, params['bo'],
      params['ln1_g'], params['ln1_b'],
      w1, params['b1'], w2, params['b2'],
      params['ln2_g'], params['ln2_b'])

    if return_attn:
        out2d, attn_hbss = outs
        return out2d.reshape(B, S, D), attn_hbss.transpose(1, 0, 2, 3)
    (out2d,) = outs
    return out2d.reshape(B, S, D)


def reference(x, mask_bool, params, n_heads):
    """Pure-JAX f32 reference matching the PyTorch forward (eval mode)."""
    B, S, D = x.shape
    dh = D // n_heads
    scale = math.sqrt(D / n_heads)

    def lin(a, w, b):
        return a @ w + b.reshape(-1)

    q = lin(x, params['wq'], params['bq']).reshape(B, S, n_heads, dh).transpose(0, 2, 1, 3)
    k = lin(x, params['wk'], params['bk']).reshape(B, S, n_heads, dh).transpose(0, 2, 1, 3)
    v = lin(x, params['wv'], params['bv']).reshape(B, S, n_heads, dh).transpose(0, 2, 1, 3)
    scores = jnp.einsum('bhqd,bhkd->bhqk', q, k) / scale
    scores = jnp.where(mask_bool, -1e10, scores)
    attn = jax.nn.softmax(scores, axis=-1)
    ctx = jnp.einsum('bhqk,bhkd->bhqd', attn, v).transpose(0, 2, 1, 3).reshape(B, S, D)
    res = lin(ctx, params['wo'], params['bo'])

    def ln(h, g, b):
        mean = jnp.mean(h, -1, keepdims=True)
        var = jnp.mean((h - mean) ** 2, -1, keepdims=True)
        return (h - mean) / jnp.sqrt(var + 1e-5) * g.reshape(-1) + b.reshape(-1)

    y = ln(x + res, params['ln1_g'], params['ln1_b'])
    ff = lin(jnp.maximum(lin(y, params['w1'], params['b1']), 0.0),
             params['w2'], params['b2'])
    out = ln(y + ff, params['ln2_g'], params['ln2_b'])
    return out, attn


if __name__ == "__main__":
    B, S, D, H, DFF = 2, 8, 32, 4, 64

    key = jax.random.PRNGKey(0)
    keys = jax.random.split(key, 14)

    def init(k, shape, s=0.1):
        return (jax.random.normal(k, shape, jnp.float32) * s).astype(jnp.float32)

    params = {
        'wq': init(keys[0], (D, D)),  'bq': init(keys[1], (1, D)),
        'wk': init(keys[2], (D, D)),  'bk': init(keys[3], (1, D)),
        'wv': init(keys[4], (D, D)),  'bv': init(keys[5], (1, D)),
        'wo': init(keys[6], (D, D)),  'bo': init(keys[7], (1, D)),
        'ln1_g': jnp.ones((1, D), jnp.float32), 'ln1_b': jnp.zeros((1, D), jnp.float32),
        'w1': init(keys[8], (D, DFF)), 'b1': init(keys[9], (1, DFF)),
        'w2': init(keys[10], (DFF, D)), 'b2': init(keys[11], (1, D)),
        'ln2_g': jnp.ones((1, D), jnp.float32), 'ln2_b': jnp.zeros((1, D), jnp.float32),
    }

    x = jax.random.normal(keys[12], (B, S, D), jnp.float32)

    # Encoder mask = key padding: True => position is masked out (-1e10 pre-softmax).
    # Batch 0: nothing masked; batch 1: last two key positions are padding.
    key_pad = jnp.array([[False] * S,
                         [False] * (S - 2) + [True, True]])
    mask_i32 = key_pad.astype(jnp.int32).reshape(B, 1, S)                   # kernel input
    mask_bool = jnp.broadcast_to(key_pad[:, None, None, :], (B, H, S, S))   # reference

    out, attn = encoder_layer(x, mask_i32, params, H, return_attn=True)
    jax.block_until_ready((out, attn))

    ref_out, ref_attn = reference(x, mask_bool, params, H)
    # bf16 MXU operands + approx-reciprocal softmax => relaxed tolerances vs f32 ref.
    assert jnp.allclose(out, ref_out, atol=5e-2, rtol=5e-2), "output mismatch"
    assert jnp.allclose(attn, ref_attn, atol=2e-2, rtol=2e-2), "attention mismatch"

    # Optional-attention path (no (B,H,S,S) materialization / HBM writeback).
    out_only = encoder_layer(x, mask_i32, params, H, return_attn=False)
    jax.block_until_ready(out_only)
    assert jnp.allclose(out_only, out, atol=1e-5, rtol=1e-5), "return_attn=False mismatch"

    print("KERNEL_OK")
</pallas_src>

<mosaic_0001>
module attributes {stable_mosaic.version = 11 : i64} {
  func.func @encoder_layer_kernel(%arg0: i32, %arg1: memref<16x32xf32, #tpu.memory_space<vmem>>, %arg2: memref<2x1x8xi32, #tpu.memory_space<vmem>>, %arg3: memref<32x96xbf16, #tpu.memory_space<vmem>>, %arg4: memref<1x96xf32, #tpu.memory_space<vmem>>, %arg5: memref<4x8x32xbf16, #tpu.memory_space<vmem>>, %arg6: memref<1x32xf32, #tpu.memory_space<vmem>>, %arg7: memref<1x32xf32, #tpu.memory_space<vmem>>, %arg8: memref<1x32xf32, #tpu.memory_space<vmem>>, %arg9: memref<32x64xbf16, #tpu.memory_space<vmem>>, %arg10: memref<1x64xf32, #tpu.memory_space<vmem>>, %arg11: memref<64x32xbf16, #tpu.memory_space<vmem>>, %arg12: memref<1x32xf32, #tpu.memory_space<vmem>>, %arg13: memref<1x32xf32, #tpu.memory_space<vmem>>, %arg14: memref<1x32xf32, #tpu.memory_space<vmem>>, %arg15: memref<16x32xf32, #tpu.memory_space<vmem>>, %arg16: memref<4x2x8x8xf32, #tpu.memory_space<vmem>>) attributes {dimension_semantics = [#tpu.dimension_semantics<arbitrary>], iteration_bounds = array<i64: 1>, scalar_prefetch = 0 : i64, scratch_operands = 0 : i64, tpu.core_type = #tpu.core_type<tc>, window_params = [{pipeline_mode = #tpu.pipeline_mode<synchronous>, transform_indices = @transform_0, window_bounds = array<i64: 16, 32>}, {pipeline_mode = #tpu.pipeline_mode<synchronous>, transform_indices = @transform_1, window_bounds = array<i64: 2, 1, 8>}, {pipeline_mode = #tpu.pipeline_mode<synchronous>, transform_indices = @transform_2, window_bounds = array<i64: 32, 96>}, {pipeline_mode = #tpu.pipeline_mode<synchronous>, transform_indices = @transform_3, window_bounds = array<i64: 1, 96>}, {pipeline_mode = #tpu.pipeline_mode<synchronous>, transform_indices = @transform_4, window_bounds = array<i64: 4, 8, 32>}, {pipeline_mode = #tpu.pipeline_mode<synchronous>, transform_indices = @transform_5, window_bounds = array<i64: 1, 32>}, {pipeline_mode = #tpu.pipeline_mode<synchronous>, transform_indices = @transform_6, window_bounds = array<i64: 1, 32>}, {pipeline_mode = #tpu.pipeline_mode<synchronous>, transform_indices = @transform_7, window_bounds = array<i64: 1, 32>}, {pipeline_mode = #tpu.pipeline_mode<synchronous>, transform_indices = @transform_8, window_bounds = array<i64: 32, 64>}, {pipeline_mode = #tpu.pipeline_mode<synchronous>, transform_indices = @transform_9, window_bounds = array<i64: 1, 64>}, {pipeline_mode = #tpu.pipeline_mode<synchronous>, transform_indices = @transform_10, window_bounds = array<i64: 64, 32>}, {pipeline_mode = #tpu.pipeline_mode<synchronous>, transform_indices = @transform_11, window_bounds = array<i64: 1, 32>}, {pipeline_mode = #tpu.pipeline_mode<synchronous>, transform_indices = @transform_12, window_bounds = array<i64: 1, 32>}, {pipeline_mode = #tpu.pipeline_mode<synchronous>, transform_indices = @transform_13, window_bounds = array<i64: 1, 32>}, {pipeline_mode = #tpu.pipeline_mode<synchronous>, transform_indices = @transform_14, window_bounds = array<i64: 16, 32>}, {pipeline_mode = #tpu.pipeline_mode<synchronous>, transform_indices = @transform_15, window_bounds = array<i64: 4, 2, 8, 8>}]} {
    %c0 = arith.constant 0 : index
    %c0_0 = arith.constant 0 : index
    %0 = vector.load %arg1[%c0, %c0_0] : memref<16x32xf32, #tpu.memory_space<vmem>>, vector<16x32xf32>
    %c0_1 = arith.constant 0 : index
    %c0_2 = arith.constant 0 : index
    %c0_3 = arith.constant 0 : index
    %1 = vector.load %arg2[%c0_1, %c0_2, %c0_3] : memref<2x1x8xi32, #tpu.memory_space<vmem>>, vector<2x1x8xi32>
    %c0_i32 = arith.constant 0 : i32
    %2 = vector.broadcast %c0_i32 : i32 to vector<2x1x8xi32>
    %3 = arith.cmpi ne, %1, %2 : vector<2x1x8xi32>
    %4 = arith.truncf %0 : vector<16x32xf32> to vector<16x32xbf16>
    %c0_4 = arith.constant 0 : index
    %c0_5 = arith.constant 0 : index
    %5 = vector.load %arg3[%c0_4, %c0_5] : memref<32x96xbf16, #tpu.memory_space<vmem>>, vector<32x96xbf16>
    %cst = arith.constant dense<0.000000e+00> : vector<16x96xf32>
    %6 = tpu.matmul %4, %5, %cst {dimension_numbers = #tpu.dot_dimension_numbers<[1], [0], [0], [1], [0, 0, 1, 1], [], []>} : vector<16x32xbf16>, vector<32x96xbf16>, vector<16x96xf32> -> vector<16x96xf32>
    %c0_6 = arith.constant 0 : index
    %c0_7 = arith.constant 0 : index
    %7 = vector.load %arg4[%c0_6, %c0_7] : memref<1x96xf32, #tpu.memory_space<vmem>>, vector<1x96xf32>
    %8 = vector.broadcast %7 : vector<1x96xf32> to vector<16x96xf32>
    %9 = arith.addf %6, %8 : vector<16x96xf32>
    %10 = vector.shape_cast %9 : vector<16x96xf32> to vector<2x8x96xf32>
    %11 = arith.truncf %10 : vector<2x8x96xf32> to vector<2x8x96xbf16>
    %cst_8 = arith.constant 0.000000e+00 : f32
    %12 = vector.broadcast %cst_8 : f32 to vector<16x32xf32>
    %13 = vector.extract_strided_slice %11 {offsets = [0, 0, 0], sizes = [2, 8, 8], strides = [1, 1, 1]} : vector<2x8x96xbf16> to vector<2x8x8xbf16>
    %14 = vector.extract_strided_slice %11 {offsets = [0, 0, 32], sizes = [2, 8, 8], strides = [1, 1, 1]} : vector<2x8x96xbf16> to vector<2x8x8xbf16>
    %15 = vector.extract_strided_slice %11 {offsets = [0, 0, 64], sizes = [2, 8, 8], strides = [1, 1, 1]} : vector<2x8x96xbf16> to vector<2x8x8xbf16>
    "tpu.trace_start"() <{level = 10 : i32, message = "bqd,bkd->bqk"}> : () -> ()
    %cst_9 = arith.constant dense<0.000000e+00> : vector<2x8x8xf32>
    %16 = tpu.matmul %13, %14, %cst_9 {dimension_numbers = #tpu.dot_dimension_numbers<[2], [2], [1], [1], [0, 0, 0, 1, 1, 1], [0], [0]>} : vector<2x8x8xbf16>, vector<2x8x8xbf16>, vector<2x8x8xf32> -> vector<2x8x8xf32>
    "tpu.trace_stop"() : () -> ()
    %cst_10 = arith.constant 0.353553385 : f32
    %17 = vector.broadcast %cst_10 : f32 to vector<2x8x8xf32>
    %18 = arith.mulf %16, %17 : vector<2x8x8xf32>
    %cst_11 = arith.constant -1.000000e+10 : f32
    %19 = vector.shape_cast %3 : vector<2x1x8xi1> to vector<2x1x8xi1>
    %20 = vector.broadcast %19 : vector<2x1x8xi1> to vector<2x8x8xi1>
    %21 = vector.broadcast %cst_11 : f32 to vector<2x8x8xf32>
    %22 = arith.select %20, %21, %18 : vector<2x8x8xi1>, vector<2x8x8xf32>
    %cst_12 = arith.constant dense<0xFF800000> : vector<2x8xf32>
    %23 = vector.multi_reduction <maximumf>, %22, %cst_12 [2] : vector<2x8x8xf32> to vector<2x8xf32>
    %24 = vector.shape_cast %23 : vector<2x8xf32> to vector<2x8x1xf32>
    %25 = vector.broadcast %24 : vector<2x8x1xf32> to vector<2x8x8xf32>
    %26 = arith.subf %22, %25 : vector<2x8x8xf32>
    %27 = math.exp %26 : vector<2x8x8xf32>
    %cst_13 = arith.constant dense<0.000000e+00> : vector<2x8xf32>
    %28 = vector.multi_reduction <add>, %27, %cst_13 [2] : vector<2x8x8xf32> to vector<2x8xf32>
    %29 = vector.shape_cast %28 : vector<2x8xf32> to vector<2x8x1xf32>
    %30 = tpu.reciprocal %29 {approx = true} : vector<2x8x1xf32> -> vector<2x8x1xf32>
    %31 = vector.broadcast %30 : vector<2x8x1xf32> to vector<2x8x8xf32>
    %32 = arith.mulf %27, %31 : vector<2x8x8xf32>
    %c0_14 = arith.constant 0 : index
    %c0_15 = arith.constant 0 : index
    %c0_16 = arith.constant 0 : index
    %c0_17 = arith.constant 0 : index
    %33 = vector.load %arg16[%c0_14, %c0_15, %c0_16, %c0_17] : memref<4x2x8x8xf32, #tpu.memory_space<vmem>>, vector<1x2x8x8xf32>
    %34 = vector.shape_cast %33 : vector<1x2x8x8xf32> to vector<2x8x8xf32>
    %35 = vector.shape_cast %32 : vector<2x8x8xf32> to vector<1x2x8x8xf32>
    tpu.vector_store %arg16[%c0_14, %c0_15, %c0_16, %c0_17], %35 {strides = array<i32>} : memref<4x2x8x8xf32, #tpu.memory_space<vmem>>, vector<1x2x8x8xf32>,
    %36 = arith.truncf %32 : vector<2x8x8xf32> to vector<2x8x8xbf16>
    "tpu.trace_start"() <{level = 10 : i32, message = "bqk,bkd->bqd"}> : () -> ()
    %cst_18 = arith.constant dense<0.000000e+00> : vector<2x8x8xf32>
    %37 = tpu.matmul %36, %15, %cst_18 {dimension_numbers = #tpu.dot_dimension_numbers<[2], [1], [1], [2], [0, 0, 0, 1, 1, 2], [0], [0]>} : vector<2x8x8xbf16>, vector<2x8x8xbf16>, vector<2x8x8xf32> -> vector<2x8x8xf32>
    "tpu.trace_stop"() : () -> ()
    %38 = vector.shape_cast %37 : vector<2x8x8xf32> to vector<16x8xf32>
    %39 = arith.truncf %38 : vector<16x8xf32> to vector<16x8xbf16>
    %c0_19 = arith.constant 0 : index
    %c0_20 = arith.constant 0 : index
    %c0_21 = arith.constant 0 : index
    %40 = vector.load %arg5[%c0_19, %c0_20, %c0_21] : memref<4x8x32xbf16, #tpu.memory_space<vmem>>, vector<1x8x32xbf16>
    %41 = vector.shape_cast %40 : vector<1x8x32xbf16> to vector<8x32xbf16>
    %cst_22 = arith.constant dense<0.000000e+00> : vector<16x32xf32>
    %42 = tpu.matmul %39, %41, %cst_22 {dimension_numbers = #tpu.dot_dimension_numbers<[1], [0], [0], [1], [0, 0, 1, 1], [], []>} : vector<16x8xbf16>, vector<8x32xbf16>, vector<16x32xf32> -> vector<16x32xf32>
    %43 = arith.addf %12, %42 : vector<16x32xf32>
    %44 = vector.extract_strided_slice %11 {offsets = [0, 0, 8], sizes = [2, 8, 8], strides = [1, 1, 1]} : vector<2x8x96xbf16> to vector<2x8x8xbf16>
    %45 = vector.extract_strided_slice %11 {offsets = [0, 0, 40], sizes = [2, 8, 8], strides = [1, 1, 1]} : vector<2x8x96xbf16> to vector<2x8x8xbf16>
    %46 = vector.extract_strided_slice %11 {offsets = [0, 0, 72], sizes = [2, 8, 8], strides = [1, 1, 1]} : vector<2x8x96xbf16> to vector<2x8x8xbf16>
    "tpu.trace_start"() <{level = 10 : i32, message = "bqd,bkd->bqk"}> : () -> ()
    %cst_23 = arith.constant dense<0.000000e+00> : vector<2x8x8xf32>
    %47 = tpu.matmul %44, %45, %cst_23 {dimension_numbers = #tpu.dot_dimension_numbers<[2], [2], [1], [1], [0, 0, 0, 1, 1, 1], [0], [0]>} : vector<2x8x8xbf16>, vector<2x8x8xbf16>, vector<2x8x8xf32> -> vector<2x8x8xf32>
    "tpu.trace_stop"() : () -> ()
    %cst_24 = arith.constant 0.353553385 : f32
    %48 = vector.broadcast %cst_24 : f32 to vector<2x8x8xf32>
    %49 = arith.mulf %47, %48 : vector<2x8x8xf32>
    %cst_25 = arith.constant -1.000000e+10 : f32
    %50 = vector.shape_cast %3 : vector<2x1x8xi1> to vector<2x1x8xi1>
    %51 = vector.broadcast %50 : vector<2x1x8xi1> to vector<2x8x8xi1>
    %52 = vector.broadcast %cst_25 : f32 to vector<2x8x8xf32>
    %53 = arith.select %51, %52, %49 : vector<2x8x8xi1>, vector<2x8x8xf32>
    %cst_26 = arith.constant dense<0xFF800000> : vector<2x8xf32>
    %54 = vector.multi_reduction <maximumf>, %53, %cst_26 [2] : vector<2x8x8xf32> to vector<2x8xf32>
    %55 = vector.shape_cast %54 : vector<2x8xf32> to vector<2x8x1xf32>
    %56 = vector.broadcast %55 : vector<2x8x1xf32> to vector<2x8x8xf32>
    %57 = arith.subf %53, %56 : vector<2x8x8xf32>
    %58 = math.exp %57 : vector<2x8x8xf32>
    %cst_27 = arith.constant dense<0.000000e+00> : vector<2x8xf32>
    %59 = vector.multi_reduction <add>, %58, %cst_27 [2] : vector<2x8x8xf32> to vector<2x8xf32>
    %60 = vector.shape_cast %59 : vector<2x8xf32> to vector<2x8x1xf32>
    %61 = tpu.reciprocal %60 {approx = true} : vector<2x8x1xf32> -> vector<2x8x1xf32>
    %62 = vector.broadcast %61 : vector<2x8x1xf32> to vector<2x8x8xf32>
    %63 = arith.mulf %58, %62 : vector<2x8x8xf32>
    %c1 = arith.constant 1 : index
    %c0_28 = arith.constant 0 : index
    %c0_29 = arith.constant 0 : index
    %c0_30 = arith.constant 0 : index
    %64 = vector.load %arg16[%c1, %c0_28, %c0_29, %c0_30] : memref<4x2x8x8xf32, #tpu.memory_space<vmem>>, vector<1x2x8x8xf32>
    %65 = vector.shape_cast %64 : vector<1x2x8x8xf32> to vector<2x8x8xf32>
    %66 = vector.shape_cast %63 : vector<2x8x8xf32> to vector<1x2x8x8xf32>
    tpu.vector_store %arg16[%c1, %c0_28, %c0_29, %c0_30], %66 {strides = array<i32>} : memref<4x2x8x8xf32, #tpu.memory_space<vmem>>, vector<1x2x8x8xf32>,
    %67 = arith.truncf %63 : vector<2x8x8xf32> to vector<2x8x8xbf16>
    "tpu.trace_start"() <{level = 10 : i32, message = "bqk,bkd->bqd"}> : () -> ()
    %cst_31 = arith.constant dense<0.000000e+00> : vector<2x8x8xf32>
    %68 = tpu.matmul %67, %46, %cst_31 {dimension_numbers = #tpu.dot_dimension_numbers<[2], [1], [1], [2], [0, 0, 0, 1, 1, 2], [0], [0]>} : vector<2x8x8xbf16>, vector<2x8x8xbf16>, vector<2x8x8xf32> -> vector<2x8x8xf32>
    "tpu.trace_stop"() : () -> ()
    %69 = vector.shape_cast %68 : vector<2x8x8xf32> to vector<16x8xf32>
    %70 = arith.truncf %69 : vector<16x8xf32> to vector<16x8xbf16>
    %c1_32 = arith.constant 1 : index
    %c0_33 = arith.constant 0 : index
    %c0_34 = arith.constant 0 : index
    %71 = vector.load %arg5[%c1_32, %c0_33, %c0_34] : memref<4x8x32xbf16, #tpu.memory_space<vmem>>, vector<1x8x32xbf16>
    %72 = vector.shape_cast %71 : vector<1x8x32xbf16> to vector<8x32xbf16>
    %cst_35 = arith.constant dense<0.000000e+00> : vector<16x32xf32>
    %73 = tpu.matmul %70, %72, %cst_35 {dimension_numbers = #tpu.dot_dimension_numbers<[1], [0], [0], [1], [0, 0, 1, 1], [], []>} : vector<16x8xbf16>, vector<8x32xbf16>, vector<16x32xf32> -> vector<16x32xf32>
    %74 = arith.addf %43, %73 : vector<16x32xf32>
    %75 = vector.extract_strided_slice %11 {offsets = [0, 0, 16], sizes = [2, 8, 8], strides = [1, 1, 1]} : vector<2x8x96xbf16> to vector<2x8x8xbf16>
    %76 = vector.extract_strided_slice %11 {offsets = [0, 0, 48], sizes = [2, 8, 8], strides = [1, 1, 1]} : vector<2x8x96xbf16> to vector<2x8x8xbf16>
    %77 = vector.extract_strided_slice %11 {offsets = [0, 0, 80], sizes = [2, 8, 8], strides = [1, 1, 1]} : vector<2x8x96xbf16> to vector<2x8x8xbf16>
    "tpu.trace_start"() <{level = 10 : i32, message = "bqd,bkd->bqk"}> : () -> ()
    %cst_36 = arith.constant dense<0.000000e+00> : vector<2x8x8xf32>
    %78 = tpu.matmul %75, %76, %cst_36 {dimension_numbers = #tpu.dot_dimension_numbers<[2], [2], [1], [1], [0, 0, 0, 1, 1, 1], [0], [0]>} : vector<2x8x8xbf16>, vector<2x8x8xbf16>, vector<2x8x8xf32> -> vector<2x8x8xf32>
    "tpu.trace_stop"() : () -> ()
    %cst_37 = arith.constant 0.353553385 : f32
    %79 = vector.broadcast %cst_37 : f32 to vector<2x8x8xf32>
    %80 = arith.mulf %78, %79 : vector<2x8x8xf32>
    %cst_38 = arith.constant -1.000000e+10 : f32
    %81 = vector.shape_cast %3 : vector<2x1x8xi1> to vector<2x1x8xi1>
    %82 = vector.broadcast %81 : vector<2x1x8xi1> to vector<2x8x8xi1>
    %83 = vector.broadcast %cst_38 : f32 to vector<2x8x8xf32>
    %84 = arith.select %82, %83, %80 : vector<2x8x8xi1>, vector<2x8x8xf32>
    %cst_39 = arith.constant dense<0xFF800000> : vector<2x8xf32>
    %85 = vector.multi_reduction <maximumf>, %84, %cst_39 [2] : vector<2x8x8xf32> to vector<2x8xf32>
    %86 = vector.shape_cast %85 : vector<2x8xf32> to vector<2x8x1xf32>
    %87 = vector.broadcast %86 : vector<2x8x1xf32> to vector<2x8x8xf32>
    %88 = arith.subf %84, %87 : vector<2x8x8xf32>
    %89 = math.exp %88 : vector<2x8x8xf32>
    %cst_40 = arith.constant dense<0.000000e+00> : vector<2x8xf32>
    %90 = vector.multi_reduction <add>, %89, %cst_40 [2] : vector<2x8x8xf32> to vector<2x8xf32>
    %91 = vector.shape_cast %90 : vector<2x8xf32> to vector<2x8x1xf32>
    %92 = tpu.reciprocal %91 {approx = true} : vector<2x8x1xf32> -> vector<2x8x1xf32>
    %93 = vector.broadcast %92 : vector<2x8x1xf32> to vector<2x8x8xf32>
    %94 = arith.mulf %89, %93 : vector<2x8x8xf32>
    %c2 = arith.constant 2 : index
    %c0_41 = arith.constant 0 : index
    %c0_42 = arith.constant 0 : index
    %c0_43 = arith.constant 0 : index
    %95 = vector.load %arg16[%c2, %c0_41, %c0_42, %c0_43] : memref<4x2x8x8xf32, #tpu.memory_space<vmem>>, vector<1x2x8x8xf32>
    %96 = vector.shape_cast %95 : vector<1x2x8x8xf32> to vector<2x8x8xf32>
    %97 = vector.shape_cast %94 : vector<2x8x8xf32> to vector<1x2x8x8xf32>
    tpu.vector_store %arg16[%c2, %c0_41, %c0_42, %c0_43], %97 {strides = array<i32>} : memref<4x2x8x8xf32, #tpu.memory_space<vmem>>, vector<1x2x8x8xf32>,
    %98 = arith.truncf %94 : vector<2x8x8xf32> to vector<2x8x8xbf16>
    "tpu.trace_start"() <{level = 10 : i32, message = "bqk,bkd->bqd"}> : () -> ()
    %cst_44 = arith.constant dense<0.000000e+00> : vector<2x8x8xf32>
    %99 = tpu.matmul %98, %77, %cst_44 {dimension_numbers = #tpu.dot_dimension_numbers<[2], [1], [1], [2], [0, 0, 0, 1, 1, 2], [0], [0]>} : vector<2x8x8xbf16>, vector<2x8x8xbf16>, vector<2x8x8xf32> -> vector<2x8x8xf32>
    "tpu.trace_stop"() : () -> ()
    %100 = vector.shape_cast %99 : vector<2x8x8xf32> to vector<16x8xf32>
    %101 = arith.truncf %100 : vector<16x8xf32> to vector<16x8xbf16>
    %c2_45 = arith.constant 2 : index
    %c0_46 = arith.constant 0 : index
    %c0_47 = arith.constant 0 : index
    %102 = vector.load %arg5[%c2_45, %c0_46, %c0_47] : memref<4x8x32xbf16, #tpu.memory_space<vmem>>, vector<1x8x32xbf16>
    %103 = vector.shape_cast %102 : vector<1x8x32xbf16> to vector<8x32xbf16>
    %cst_48 = arith.constant dense<0.000000e+00> : vector<16x32xf32>
    %104 = tpu.matmul %101, %103, %cst_48 {dimension_numbers = #tpu.dot_dimension_numbers<[1], [0], [0], [1], [0, 0, 1, 1], [], []>} : vector<16x8xbf16>, vector<8x32xbf16>, vector<16x32xf32> -> vector<16x32xf32>
    %105 = arith.addf %74, %104 : vector<16x32xf32>
    %106 = vector.extract_strided_slice %11 {offsets = [0, 0, 24], sizes = [2, 8, 8], strides = [1, 1, 1]} : vector<2x8x96xbf16> to vector<2x8x8xbf16>
    %107 = vector.extract_strided_slice %11 {offsets = [0, 0, 56], sizes = [2, 8, 8], strides = [1, 1, 1]} : vector<2x8x96xbf16> to vector<2x8x8xbf16>
    %108 = vector.extract_strided_slice %11 {offsets = [0, 0, 88], sizes = [2, 8, 8], strides = [1, 1, 1]} : vector<2x8x96xbf16> to vector<2x8x8xbf16>
    "tpu.trace_start"() <{level = 10 : i32, message = "bqd,bkd->bqk"}> : () -> ()
    %cst_49 = arith.constant dense<0.000000e+00> : vector<2x8x8xf32>
    %109 = tpu.matmul %106, %107, %cst_49 {dimension_numbers = #tpu.dot_dimension_numbers<[2], [2], [1], [1], [0, 0, 0, 1, 1, 1], [0], [0]>} : vector<2x8x8xbf16>, vector<2x8x8xbf16>, vector<2x8x8xf32> -> vector<2x8x8xf32>
    "tpu.trace_stop"() : () -> ()
    %cst_50 = arith.constant 0.353553385 : f32
    %110 = vector.broadcast %cst_50 : f32 to vector<2x8x8xf32>
    %111 = arith.mulf %109, %110 : vector<2x8x8xf32>
    %cst_51 = arith.constant -1.000000e+10 : f32
    %112 = vector.shape_cast %3 : vector<2x1x8xi1> to vector<2x1x8xi1>
    %113 = vector.broadcast %112 : vector<2x1x8xi1> to vector<2x8x8xi1>
    %114 = vector.broadcast %cst_51 : f32 to vector<2x8x8xf32>
    %115 = arith.select %113, %114, %111 : vector<2x8x8xi1>, vector<2x8x8xf32>
    %cst_52 = arith.constant dense<0xFF800000> : vector<2x8xf32>
    %116 = vector.multi_reduction <maximumf>, %115, %cst_52 [2] : vector<2x8x8xf32> to vector<2x8xf32>
    %117 = vector.shape_cast %116 : vector<2x8xf32> to vector<2x8x1xf32>
    %118 = vector.broadcast %117 : vector<2x8x1xf32> to vector<2x8x8xf32>
    %119 = arith.subf %115, %118 : vector<2x8x8xf32>
    %120 = math.exp %119 : vector<2x8x8xf32>
    %cst_53 = arith.constant dense<0.000000e+00> : vector<2x8xf32>
    %121 = vector.multi_reduction <add>, %120, %cst_53 [2] : vector<2x8x8xf32> to vector<2x8xf32>
    %122 = vector.shape_cast %121 : vector<2x8xf32> to vector<2x8x1xf32>
    %123 = tpu.reciprocal %122 {approx = true} : vector<2x8x1xf32> -> vector<2x8x1xf32>
    %124 = vector.broadcast %123 : vector<2x8x1xf32> to vector<2x8x8xf32>
    %125 = arith.mulf %120, %124 : vector<2x8x8xf32>
    %c3 = arith.constant 3 : index
    %c0_54 = arith.constant 0 : index
    %c0_55 = arith.constant 0 : index
    %c0_56 = arith.constant 0 : index
    %126 = vector.load %arg16[%c3, %c0_54, %c0_55, %c0_56] : memref<4x2x8x8xf32, #tpu.memory_space<vmem>>, vector<1x2x8x8xf32>
    %127 = vector.shape_cast %126 : vector<1x2x8x8xf32> to vector<2x8x8xf32>
    %128 = vector.shape_cast %125 : vector<2x8x8xf32> to vector<1x2x8x8xf32>
    tpu.vector_store %arg16[%c3, %c0_54, %c0_55, %c0_56], %128 {strides = array<i32>} : memref<4x2x8x8xf32, #tpu.memory_space<vmem>>, vector<1x2x8x8xf32>,
    %129 = arith.truncf %125 : vector<2x8x8xf32> to vector<2x8x8xbf16>
    "tpu.trace_start"() <{level = 10 : i32, message = "bqk,bkd->bqd"}> : () -> ()
    %cst_57 = arith.constant dense<0.000000e+00> : vector<2x8x8xf32>
    %130 = tpu.matmul %129, %108, %cst_57 {dimension_numbers = #tpu.dot_dimension_numbers<[2], [1], [1], [2], [0, 0, 0, 1, 1, 2], [0], [0]>} : vector<2x8x8xbf16>, vector<2x8x8xbf16>, vector<2x8x8xf32> -> vector<2x8x8xf32>
    "tpu.trace_stop"() : () -> ()
    %131 = vector.shape_cast %130 : vector<2x8x8xf32> to vector<16x8xf32>
    %132 = arith.truncf %131 : vector<16x8xf32> to vector<16x8xbf16>
    %c3_58 = arith.constant 3 : index
    %c0_59 = arith.constant 0 : index
    %c0_60 = arith.constant 0 : index
    %133 = vector.load %arg5[%c3_58, %c0_59, %c0_60] : memref<4x8x32xbf16, #tpu.memory_space<vmem>>, vector<1x8x32xbf16>
    %134 = vector.shape_cast %133 : vector<1x8x32xbf16> to vector<8x32xbf16>
    %cst_61 = arith.constant dense<0.000000e+00> : vector<16x32xf32>
    %135 = tpu.matmul %132, %134, %cst_61 {dimension_numbers = #tpu.dot_dimension_numbers<[1], [0], [0], [1], [0, 0, 1, 1], [], []>} : vector<16x8xbf16>, vector<8x32xbf16>, vector<16x32xf32> -> vector<16x32xf32>
    %136 = arith.addf %105, %135 : vector<16x32xf32>
    %c0_62 = arith.constant 0 : index
    %c0_63 = arith.constant 0 : index
    %137 = vector.load %arg6[%c0_62, %c0_63] : memref<1x32xf32, #tpu.memory_space<vmem>>, vector<1x32xf32>
    %138 = vector.broadcast %137 : vector<1x32xf32> to vector<16x32xf32>
    %139 = arith.addf %136, %138 : vector<16x32xf32>
    %140 = arith.addf %0, %139 : vector<16x32xf32>
    %cst_64 = arith.constant dense<0.000000e+00> : vector<16xf32>
    %141 = vector.multi_reduction <add>, %140, %cst_64 [1] : vector<16x32xf32> to vector<16xf32>
    %142 = vector.shape_cast %141 : vector<16xf32> to vector<16x1xf32>
    %cst_65 = arith.constant 3.125000e-02 : f32
    %143 = vector.broadcast %cst_65 : f32 to vector<16x1xf32>
    %144 = arith.mulf %142, %143 : vector<16x1xf32>
    %145 = vector.broadcast %144 : vector<16x1xf32> to vector<16x32xf32>
    %146 = arith.subf %140, %145 : vector<16x32xf32>
    %147 = arith.mulf %146, %146 : vector<16x32xf32>
    %cst_66 = arith.constant dense<0.000000e+00> : vector<16xf32>
    %148 = vector.multi_reduction <add>, %147, %cst_66 [1] : vector<16x32xf32> to vector<16xf32>
    %149 = vector.shape_cast %148 : vector<16xf32> to vector<16x1xf32>
    %cst_67 = arith.constant 3.125000e-02 : f32
    %150 = vector.broadcast %cst_67 : f32 to vector<16x1xf32>
    %151 = arith.mulf %149, %150 : vector<16x1xf32>
    %cst_68 = arith.constant 9.99999974E-6 : f32
    %152 = vector.broadcast %cst_68 : f32 to vector<16x1xf32>
    %153 = arith.addf %151, %152 : vector<16x1xf32>
    %154 = math.rsqrt %153 : vector<16x1xf32>
    %155 = vector.broadcast %154 : vector<16x1xf32> to vector<16x32xf32>
    %156 = arith.mulf %146, %155 : vector<16x32xf32>
    %c0_69 = arith.constant 0 : index
    %c0_70 = arith.constant 0 : index
    %157 = vector.load %arg7[%c0_69, %c0_70] : memref<1x32xf32, #tpu.memory_space<vmem>>, vector<1x32xf32>
    %158 = vector.broadcast %157 : vector<1x32xf32> to vector<16x32xf32>
    %159 = arith.mulf %156, %158 : vector<16x32xf32>
    %c0_71 = arith.constant 0 : index
    %c0_72 = arith.constant 0 : index
    %160 = vector.load %arg8[%c0_71, %c0_72] : memref<1x32xf32, #tpu.memory_space<vmem>>, vector<1x32xf32>
    %161 = vector.broadcast %160 : vector<1x32xf32> to vector<16x32xf32>
    %162 = arith.addf %159, %161 : vector<16x32xf32>
    %163 = arith.truncf %162 : vector<16x32xf32> to vector<16x32xbf16>
    %c0_73 = arith.constant 0 : index
    %c0_74 = arith.constant 0 : index
    %164 = vector.load %arg9[%c0_73, %c0_74] : memref<32x64xbf16, #tpu.memory_space<vmem>>, vector<32x64xbf16>
    %cst_75 = arith.constant dense<0.000000e+00> : vector<16x64xf32>
    %165 = tpu.matmul %163, %164, %cst_75 {dimension_numbers = #tpu.dot_dimension_numbers<[1], [0], [0], [1], [0, 0, 1, 1], [], []>} : vector<16x32xbf16>, vector<32x64xbf16>, vector<16x64xf32> -> vector<16x64xf32>
    %c0_76 = arith.constant 0 : index
    %c0_77 = arith.constant 0 : index
    %166 = vector.load %arg10[%c0_76, %c0_77] : memref<1x64xf32, #tpu.memory_space<vmem>>, vector<1x64xf32>
    %167 = vector.broadcast %166 : vector<1x64xf32> to vector<16x64xf32>
    %168 = arith.addf %165, %167 : vector<16x64xf32>
    %cst_78 = arith.constant 0.000000e+00 : f32
    %169 = vector.broadcast %cst_78 : f32 to vector<16x64xf32>
    %170 = arith.maximumf %168, %169 : vector<16x64xf32>
    %171 = arith.truncf %170 : vector<16x64xf32> to vector<16x64xbf16>
    %c0_79 = arith.constant 0 : index
    %c0_80 = arith.constant 0 : index
    %172 = vector.load %arg11[%c0_79, %c0_80] : memref<64x32xbf16, #tpu.memory_space<vmem>>, vector<64x32xbf16>
    %cst_81 = arith.constant dense<0.000000e+00> : vector<16x32xf32>
    %173 = tpu.matmul %171, %172, %cst_81 {dimension_numbers = #tpu.dot_dimension_numbers<[1], [0], [0], [1], [0, 0, 1, 1], [], []>} : vector<16x64xbf16>, vector<64x32xbf16>, vector<16x32xf32> -> vector<16x32xf32>
    %c0_82 = arith.constant 0 : index
    %c0_83 = arith.constant 0 : index
    %174 = vector.load %arg12[%c0_82, %c0_83] : memref<1x32xf32, #tpu.memory_space<vmem>>, vector<1x32xf32>
    %175 = vector.broadcast %174 : vector<1x32xf32> to vector<16x32xf32>
    %176 = arith.addf %173, %175 : vector<16x32xf32>
    %177 = arith.addf %162, %176 : vector<16x32xf32>
    %cst_84 = arith.constant dense<0.000000e+00> : vector<16xf32>
    %178 = vector.multi_reduction <add>, %177, %cst_84 [1] : vector<16x32xf32> to vector<16xf32>
    %179 = vector.shape_cast %178 : vector<16xf32> to vector<16x1xf32>
    %cst_85 = arith.constant 3.125000e-02 : f32
    %180 = vector.broadcast %cst_85 : f32 to vector<16x1xf32>
    %181 = arith.mulf %179, %180 : vector<16x1xf32>
    %182 = vector.broadcast %181 : vector<16x1xf32> to vector<16x32xf32>
    %183 = arith.subf %177, %182 : vector<16x32xf32>
    %184 = arith.mulf %183, %183 : vector<16x32xf32>
    %cst_86 = arith.constant dense<0.000000e+00> : vector<16xf32>
    %185 = vector.multi_reduction <add>, %184, %cst_86 [1] : vector<16x32xf32> to vector<16xf32>
    %186 = vector.shape_cast %185 : vector<16xf32> to vector<16x1xf32>
    %cst_87 = arith.constant 3.125000e-02 : f32
    %187 = vector.broadcast %cst_87 : f32 to vector<16x1xf32>
    %188 = arith.mulf %186, %187 : vector<16x1xf32>
    %cst_88 = arith.constant 9.99999974E-6 : f32
    %189 = vector.broadcast %cst_88 : f32 to vector<16x1xf32>
    %190 = arith.addf %188, %189 : vector<16x1xf32>
    %191 = math.rsqrt %190 : vector<16x1xf32>
    %192 = vector.broadcast %191 : vector<16x1xf32> to vector<16x32xf32>
    %193 = arith.mulf %183, %192 : vector<16x32xf32>
    %c0_89 = arith.constant 0 : index
    %c0_90 = arith.constant 0 : index
    %194 = vector.load %arg13[%c0_89, %c0_90] : memref<1x32xf32, #tpu.memory_space<vmem>>, vector<1x32xf32>
    %195 = vector.broadcast %194 : vector<1x32xf32> to vector<16x32xf32>
    %196 = arith.mulf %193, %195 : vector<16x32xf32>
    %c0_91 = arith.constant 0 : index
    %c0_92 = arith.constant 0 : index
    %197 = vector.load %arg14[%c0_91, %c0_92] : memref<1x32xf32, #tpu.memory_space<vmem>>, vector<1x32xf32>
    %198 = vector.broadcast %197 : vector<1x32xf32> to vector<16x32xf32>
    %199 = arith.addf %196, %198 : vector<16x32xf32>
    %c0_93 = arith.constant 0 : index
    %c0_94 = arith.constant 0 : index
    %200 = vector.load %arg15[%c0_93, %c0_94] : memref<16x32xf32, #tpu.memory_space<vmem>>, vector<16x32xf32>
    tpu.vector_store %arg15[%c0_93, %c0_94], %199 {strides = array<i32>} : memref<16x32xf32, #tpu.memory_space<vmem>>, vector<16x32xf32>,
    return
  }
  func.func @transform_0(%arg0: i32) -> (i32, i32) {
    %c0_i32 = arith.constant 0 : i32
    %c0_i32_0 = arith.constant 0 : i32
    %c0_i32_1 = arith.constant 0 : i32
    return %c0_i32, %c0_i32_0 : i32, i32
  }
  func.func @transform_1(%arg0: i32) -> (i32, i32, i32) {
    %c0_i32 = arith.constant 0 : i32
    %c0_i32_0 = arith.constant 0 : i32
    %c0_i32_1 = arith.constant 0 : i32
    %c0_i32_2 = arith.constant 0 : i32
    return %c0_i32, %c0_i32_0, %c0_i32_1 : i32, i32, i32
  }
  func.func @transform_2(%arg0: i32) -> (i32, i32) {
    %c0_i32 = arith.constant 0 : i32
    %c0_i32_0 = arith.constant 0 : i32
    %c0_i32_1 = arith.constant 0 : i32
    return %c0_i32, %c0_i32_0 : i32, i32
  }
  func.func @transform_3(%arg0: i32) -> (i32, i32) {
    %c0_i32 = arith.constant 0 : i32
    %c0_i32_0 = arith.constant 0 : i32
    %c0_i32_1 = arith.constant 0 : i32
    return %c0_i32, %c0_i32_0 : i32, i32
  }
  func.func @transform_4(%arg0: i32) -> (i32, i32, i32) {
    %c0_i32 = arith.constant 0 : i32
    %c0_i32_0 = arith.constant 0 : i32
    %c0_i32_1 = arith.constant 0 : i32
    %c0_i32_2 = arith.constant 0 : i32
    return %c0_i32, %c0_i32_0, %c0_i32_1 : i32, i32, i32
  }
  func.func @transform_5(%arg0: i32) -> (i32, i32) {
    %c0_i32 = arith.constant 0 : i32
    %c0_i32_0 = arith.constant 0 : i32
    %c0_i32_1 = arith.constant 0 : i32
    return %c0_i32, %c0_i32_0 : i32, i32
  }
  func.func @transform_6(%arg0: i32) -> (i32, i32) {
    %c0_i32 = arith.constant 0 : i32
    %c0_i32_0 = arith.constant 0 : i32
    %c0_i32_1 = arith.constant 0 : i32
    return %c0_i32, %c0_i32_0 : i32, i32
  }
  func.func @transform_7(%arg0: i32) -> (i32, i32) {
    %c0_i32 = arith.constant 0 : i32
    %c0_i32_0 = arith.constant 0 : i32
    %c0_i32_1 = arith.constant 0 : i32
    return %c0_i32, %c0_i32_0 : i32, i32
  }
  func.func @transform_8(%arg0: i32) -> (i32, i32) {
    %c0_i32 = arith.constant 0 : i32
    %c0_i32_0 = arith.constant 0 : i32
    %c0_i32_1 = arith.constant 0 : i32
    return %c0_i32, %c0_i32_0 : i32, i32
  }
  func.func @transform_9(%arg0: i32) -> (i32, i32) {
    %c0_i32 = arith.constant 0 : i32
    %c0_i32_0 = arith.constant 0 : i32
    %c0_i32_1 = arith.constant 0 : i32
    return %c0_i32, %c0_i32_0 : i32, i32
  }
  func.func @transform_10(%arg0: i32) -> (i32, i32) {
    %c0_i32 = arith.constant 0 : i32
    %c0_i32_0 = arith.constant 0 : i32
    %c0_i32_1 = arith.constant 0 : i32
    return %c0_i32, %c0_i32_0 : i32, i32
  }
  func.func @transform_11(%arg0: i32) -> (i32, i32) {
    %c0_i32 = arith.constant 0 : i32
    %c0_i32_0 = arith.constant 0 : i32
    %c0_i32_1 = arith.constant 0 : i32
    return %c0_i32, %c0_i32_0 : i32, i32
  }
  func.func @transform_12(%arg0: i32) -> (i32, i32) {
    %c0_i32 = arith.constant 0 : i32
    %c0_i32_0 = arith.constant 0 : i32
    %c0_i32_1 = arith.constant 0 : i32
    return %c0_i32, %c0_i32_0 : i32, i32
  }
  func.func @transform_13(%arg0: i32) -> (i32, i32) {
    %c0_i32 = arith.constant 0 : i32
    %c0_i32_0 = arith.constant 0 : i32
    %c0_i32_1 = arith.constant 0 : i32
    return %c0_i32, %c0_i32_0 : i32, i32
  }
  func.func @transform_14(%arg0: i32) -> (i32, i32) {
    %c0_i32 = arith.constant 0 : i32
    %c0_i32_0 = arith.constant 0 : i32
    %c0_i32_1 = arith.constant 0 : i32
    return %c0_i32, %c0_i32_0 : i32, i32
  }
  func.func @transform_15(%arg0: i32) -> (i32, i32, i32, i32) {
    %c0_i32 = arith.constant 0 : i32
    %c0_i32_0 = arith.constant 0 : i32
    %c0_i32_1 = arith.constant 0 : i32
    %c0_i32_2 = arith.constant 0 : i32
    %c0_i32_3 = arith.constant 0 : i32
    return %c0_i32, %c0_i32_0, %c0_i32_1, %c0_i32_2 : i32, i32, i32, i32
  }
}

</mosaic_0001>

<llo_original>
// kernel: tpu_custom_call.1
$region0: #{tpu_custom_call.1}
  #allocation0 [shape = 'u32[]', space=smem, size = 0x4, offset = 0x4, fixed_abs, tag = 'smem constant byte address 0x4 - core index']
  #allocation1 [shape = 'u32[72,128]{1,0:T(1,128)}', space=vmem, size = 0x9000, scoped, tag = 'internal scratch']
  %s0 = inlined_call_operand.vmem [shape: f32[16,32], index: 0, kind: input, shape index: {}]
  %s1 = inlined_call_operand.hbm [shape: s32[2,1,8], index: 1, kind: input, shape index: {}]
  %s2 = inlined_call_operand.vmem [shape: bf16[32,96], index: 2, kind: input, shape index: {}]
  %s3 = inlined_call_operand.vmem [shape: f32[1,96], index: 3, kind: input, shape index: {}]
  %s4 = inlined_call_operand.vmem [shape: bf16[4,8,32], index: 4, kind: input, shape index: {}]
  %s5 = inlined_call_operand.vmem [shape: f32[1,32], index: 5, kind: input, shape index: {}]
  %s6 = inlined_call_operand.vmem [shape: f32[1,32], index: 6, kind: input, shape index: {}]
  %s7 = inlined_call_operand.vmem [shape: f32[1,32], index: 7, kind: input, shape index: {}]
  %s8 = inlined_call_operand.hbm [shape: bf16[32,64], index: 8, kind: input, shape index: {}]
  %s9 = inlined_call_operand.vmem [shape: f32[1,64], index: 9, kind: input, shape index: {}]
  %s10 = inlined_call_operand.vmem [shape: bf16[64,32], index: 10, kind: input, shape index: {}]
  %s11 = inlined_call_operand.vmem [shape: f32[1,32], index: 11, kind: input, shape index: {}]
  %s12 = inlined_call_operand.vmem [shape: f32[1,32], index: 12, kind: input, shape index: {}]
  %s13 = inlined_call_operand.vmem [shape: f32[1,32], index: 13, kind: input, shape index: {}]
  %s14 = inlined_call_operand.hbm [shape: f32[16,32], index: 14, kind: output, shape index: {0}]
  %s15 = inlined_call_operand.hbm [shape: f32[4,2,8,8], index: 15, kind: output, shape index: {1}]
  %16 = xla_tuple %s14, %s15
  %s17 = sld [smem:[#allocation0]]
  $region82: #{tpu_custom_call.1} parent=0
    _
  %s19 = ssub.s32 1, %s17
  %s20 = scalar_select 0, %s19, %s17
  $region1: #{tpu_custom_call.1} parent=0
    #allocation2 [shape = 'u8[1024]{0}', space=vmem, size = 0x400, scoped, tag = 'input window, operand 1, single buffered']
    #allocation3 [shape = 's32[1]{0}', space=sflag, size = 0x4, scoped, tag = 'scoped memory for tpu_custom_call.1']
    #allocation4 [shape = 's32[1]{0}', space=sflag, size = 0x4, scoped, tag = 'scoped memory for tpu_custom_call.1']
    #allocation5 [shape = 'u8[8192]{0}', space=vmem, size = 0x2000, scoped, tag = 'input window, operand 8, single buffered']
    #allocation6 [shape = 's32[1]{0}', space=sflag, size = 0x4, scoped, tag = 'scoped memory for tpu_custom_call.1']
    #allocation7 [shape = 'u8[8192]{0}', space=vmem, size = 0x2000, scoped, tag = 'output window, operand 0, single buffered']
    #allocation8 [shape = 'u8[32768]{0}', space=vmem, size = 0x8000, scoped, tag = 'output window, operand 1, single buffered']
    #allocation9 [shape = 's32[1]{0}', space=sflag, size = 0x4, scoped, tag = 'scoped memory for tpu_custom_call.1']
    %21 = vsyncpa [#allocation3], 0
    %22 = vsyncpa [#allocation6], 0
    %23 = vsyncpa [#allocation4], 0
    %24 = vsyncpa [#allocation9], 0
    // Predicated region
    $region2: #{tpu_custom_call.1} parent=1 // pred_check
      _
    $region3: #{tpu_custom_call.1} parent=1 // pred_check_branch
      %26 = sbr.rel (0) target = $region5
    $region4: #{tpu_custom_call.1} parent=1 // pred_region
      _
    $region5: #{tpu_custom_call.1} parent=1 // pred_fallthru
      _
    // Predicated region
    $region6: #{tpu_custom_call.1} parent=1 // pred_check
      _
    $region7: #{tpu_custom_call.1} parent=1 // pred_check_branch
      %28 = sbr.rel (0) target = $region9
    $region8: #{tpu_custom_call.1} parent=1 // pred_region
      %30 = vsyncadd [#allocation3], 0
      %s31 = sshll.u32 %s1, 4
      %s32 = int_to_ptr.hbm [resolvable:$true] %s31
      %s33 = sshll.u32 [#allocation2], 4
      %s34 = int_to_ptr.vmem [resolvable:$true] %s33
      %39 = dma.hbm_to_vmem [thread:$0]  %s32, 32, %s34, [#allocation3], 16, 16, 1
    $region9: #{tpu_custom_call.1} parent=1 // pred_fallthru
      _
    // Predicated region
    $region10: #{tpu_custom_call.1} parent=1 // pred_check
      _
    $region11: #{tpu_custom_call.1} parent=1 // pred_check_branch
      %41 = sbr.rel (0) target = $region13
    $region12: #{tpu_custom_call.1} parent=1 // pred_region
      _
    $region13: #{tpu_custom_call.1} parent=1 // pred_fallthru
      _
    // Predicated region
    $region14: #{tpu_custom_call.1} parent=1 // pred_check
      _
    $region15: #{tpu_custom_call.1} parent=1 // pred_check_branch
      %43 = sbr.rel (0) target = $region17
    $region16: #{tpu_custom_call.1} parent=1 // pred_region
      _
    $region17: #{tpu_custom_call.1} parent=1 // pred_fallthru
      _
    // Predicated region
    $region18: #{tpu_custom_call.1} parent=1 // pred_check
      _
    $region19: #{tpu_custom_call.1} parent=1 // pred_check_branch
      %45 = sbr.rel (0) target = $region21
    $region20: #{tpu_custom_call.1} parent=1 // pred_region
      _
    $region21: #{tpu_custom_call.1} parent=1 // pred_fallthru
      _
    // Predicated region
    $region22: #{tpu_custom_call.1} parent=1 // pred_check
      _
    $region23: #{tpu_custom_call.1} parent=1 // pred_check_branch
      %47 = sbr.rel (0) target = $region25
    $region24: #{tpu_custom_call.1} parent=1 // pred_region
      _
    $region25: #{tpu_custom_call.1} parent=1 // pred_fallthru
      _
    // Predicated region
    $region26: #{tpu_custom_call.1} parent=1 // pred_check
      _
    $region27: #{tpu_custom_call.1} parent=1 // pred_check_branch
      %49 = sbr.rel (0) target = $region29
    $region28: #{tpu_custom_call.1} parent=1 // pred_region
      _
    $region29: #{tpu_custom_call.1} parent=1 // pred_fallthru
      _
    // Predicated region
    $region30: #{tpu_custom_call.1} parent=1 // pred_check
      _
    $region31: #{tpu_custom_call.1} parent=1 // pred_check_branch
      %51 = sbr.rel (0) target = $region33
    $region32: #{tpu_custom_call.1} parent=1 // pred_region
      _
    $region33: #{tpu_custom_call.1} parent=1 // pred_fallthru
      _
    // Predicated region
    $region34: #{tpu_custom_call.1} parent=1 // pred_check
      _
    $region35: #{tpu_custom_call.1} parent=1 // pred_check_branch
      %53 = sbr.rel (0) target = $region37
    $region36: #{tpu_custom_call.1} parent=1 // pred_region
      %55 = vsyncadd [#allocation6], 0
      %s56 = sshll.u32 %s8, 4
      %s57 = int_to_ptr.hbm [resolvable:$true] %s56
      %s58 = sshll.u32 [#allocation5], 4
      %s59 = int_to_ptr.vmem [resolvable:$true] %s58
      %64 = dma.hbm_to_vmem [thread:$0]  %s57, 256, %s59, [#allocation6], 64, 64, 4
    $region37: #{tpu_custom_call.1} parent=1 // pred_fallthru
      _
    // Predicated region
    $region38: #{tpu_custom_call.1} parent=1 // pred_check
      _
    $region39: #{tpu_custom_call.1} parent=1 // pred_check_branch
      %66 = sbr.rel (0) target = $region41
    $region40: #{tpu_custom_call.1} parent=1 // pred_region
      _
    $region41: #{tpu_custom_call.1} parent=1 // pred_fallthru
      _
    // Predicated region
    $region42: #{tpu_custom_call.1} parent=1 // pred_check
      _
    $region43: #{tpu_custom_call.1} parent=1 // pred_check_branch
      %68 = sbr.rel (0) target = $region45
    $region44: #{tpu_custom_call.1} parent=1 // pred_region
      _
    $region45: #{tpu_custom_call.1} parent=1 // pred_fallthru
      _
    // Predicated region
    $region46: #{tpu_custom_call.1} parent=1 // pred_check
      _
    $region47: #{tpu_custom_call.1} parent=1 // pred_check_branch
      %70 = sbr.rel (0) target = $region49
    $region48: #{tpu_custom_call.1} parent=1 // pred_region
      _
    $region49: #{tpu_custom_call.1} parent=1 // pred_fallthru
      _
    // Predicated region
    $region50: #{tpu_custom_call.1} parent=1 // pred_check
      _
    $region51: #{tpu_custom_call.1} parent=1 // pred_check_branch
      %72 = sbr.rel (0) target = $region53
    $region52: #{tpu_custom_call.1} parent=1 // pred_region
      _
    $region53: #{tpu_custom_call.1} parent=1 // pred_fallthru
      _
    // Predicated region
    $region54: #{tpu_custom_call.1} parent=1 // pred_check
      _
    $region55: #{tpu_custom_call.1} parent=1 // pred_check_branch
      %74 = sbr.rel (0) target = $region57
    $region56: #{tpu_custom_call.1} parent=1 // pred_region
      _
    $region57: #{tpu_custom_call.1} parent=1 // pred_fallthru
      _
    // Predicated region
    $region58: #{tpu_custom_call.1} parent=1 // pred_check
      _
    $region59: #{tpu_custom_call.1} parent=1 // pred_check_branch
      %76 = sbr.rel (0) target = $region61
    $region60: #{tpu_custom_call.1} parent=1 // pred_region
      %78 = dma.done [#allocation3], 32
    $region61: #{tpu_custom_call.1} parent=1 // pred_fallthru
      _
    // Predicated region
    $region62: #{tpu_custom_call.1} parent=1 // pred_check
      _
    $region63: #{tpu_custom_call.1} parent=1 // pred_check_branch
      %80 = sbr.rel (0) target = $region65
    $region64: #{tpu_custom_call.1} parent=1 // pred_region
      %82 = dma.done [#allocation6], 256
    $region65: #{tpu_custom_call.1} parent=1 // pred_fallthru
      _
    %v84 = vld [vmem:[%s0] sm:$0xff]
    %v85 = vld [vmem:[%s0 + $0x8] sm:$0xff]
    %v86 = vld [vmem:[#allocation2] sm:$0x1]
    %v87 = vld [vmem:[#allocation2 + $0x1] sm:$0x1]
    %vm88 = vcmp.ne.s32.totalorder %v86, 0
    %vm89 = vcmp.ne.s32.totalorder %v87, 0
    %v90 = vpack.c.bf16 %v85, %v84
    %v91 = vld [vmem:[%s2] sm:$0xf]
    %v92 = vld [vmem:[%s2 + $0x4] sm:$0xf]
    %v93 = vld [vmem:[%s2 + $0x8] sm:$0xf]
    %v94 = vld [vmem:[%s2 + $0xc] sm:$0xf]
    %v95 = vld [vmem:[%s3] sm:$0x1]
    %v97 = vperm.slane %v95, 0
    %v103 = vunpack.c.l.b16 %v91
    %v104 = vunpack.c.l.b16 %v92
    %v105 = vunpack.c.l.b16 %v93
    %v106 = vunpack.c.l.b16 %v94
    %v107 = vpack.c.b16 %v104, %v103
    %v108 = vpack.c.b16 %v106, %v105
    %vm111 = vcmask 261120
    %v113 = vsel %vm111, %v90, 0
    %115 = vmatpush.bf16.msra.mxu0 0
    %116 = vmatpush.bf16.msra.mxu0 0
    %117 = vmatpush.bf16.msra.mxu0 0
    %118 = vmatpush.bf16.msra.mxu0 0
    %119 = vmatpush.bf16.msra.mxu0 0
    %120 = vmatpush.bf16.msra.mxu0 0
    %121 = vmatpush.bf16.msra.mxu0 %v108
    %122 = vmatpush.bf16.msra.mxu0 %v107
    %123 = vmatmul.bf16.gmra.mxu0 %v113
    %v124 = vpop.f32.mrf.mxu0
    %v125 = vadd.f32 %v97, %v124
    %v126 = vpop.f32.mrf.mxu0
    %v127 = vadd.f32 %v97, %v126
    %128 = vdwg.mxu0
    %v129 = vpack.c.bf16 %v125, %v125
    %v130 = vpack.c.bf16 %v127, %v127
    %v132 = vunpack.c.l.b16 %v129
    %v133 = vpack.c.b16 %v132, %v132
    %134 = vrot.lane.b32.xlu0 %v133, 96
    %v135 = vpop.permute.xlu0 %134
    %vm136 = vcmask 64512
    %v138 = vsel %vm136, %v129, 0
    %v141 = vsel %vm136, %v135, 0
    %143 = vmatpush.bf16.xpose.msra.mxu0 0
    %144 = vmatpush.bf16.xpose.msra.mxu0 0
    %145 = vmatpush.bf16.xpose.msra.mxu0 0
    %146 = vmatpush.bf16.xpose.msra.mxu0 0
    %147 = vmatpush.bf16.xpose.msra.mxu0 0
    %148 = vmatpush.bf16.xpose.msra.mxu0 0
    %149 = vmatpush.bf16.xpose.msra.mxu0 0
    %150 = vmatpush.bf16.xpose.msra.mxu0 %v141
    %151 = vmatmul.bf16.gmra.mxu0 %v138
    %v152 = vpop.f32.mrf.mxu0
    %v153 = vadd.f32 0.0, %v152
    %v154 = vpop.f32.mrf.mxu0
    %155 = vdwg.mxu0
    %v157 = vunpack.c.l.b16 %v130
    %v158 = vpack.c.b16 %v157, %v157
    %159 = vrot.lane.b32.xlu0 %v158, 96
    %v160 = vpop.permute.xlu0 %159
    %v162 = vsel %vm136, %v130, 0
    %v165 = vsel %vm136, %v160, 0
    %167 = vmatpush.bf16.xpose.msra.mxu0 0
    %168 = vmatpush.bf16.xpose.msra.mxu0 0
    %169 = vmatpush.bf16.xpose.msra.mxu0 0
    %170 = vmatpush.bf16.xpose.msra.mxu0 0
    %171 = vmatpush.bf16.xpose.msra.mxu0 0
    %172 = vmatpush.bf16.xpose.msra.mxu0 0
    %173 = vmatpush.bf16.xpose.msra.mxu0 0
    %174 = vmatpush.bf16.xpose.msra.mxu0 %v165
    %175 = vmatmul.bf16.gmra.mxu0 %v162
    %v176 = vpop.f32.mrf.mxu0
    %v177 = vadd.f32 0.0, %v176
    %v178 = vpop.f32.mrf.mxu0
    %179 = vdwg.mxu0
    %v180 = vmul.f32 %v153, 0.35355338
    %v181 = vmul.f32 %v177, 0.35355338
    %v182 = vsel %vm88, 1, 0
    %v183 = vsel %vm89, 1, 0
    %v184 = vperm.slane %v182, 0
    %v185 = vperm.slane %v183, 0
    %vm186 = vcmp.eq.s32.totalorder %v184, 1
    %vm187 = vcmp.eq.s32.totalorder %v185, 1
    %v188 = vsel %vm186, -1e+10, %v180
    %v189 = vsel %vm187, -1e+10, %v181
    %v190 = vsel %vm136, %v188, -inf
    %191 = vmax.xlane.f32.xlu0 %v190
    %v192 = vpop.xlane.xlu0 %191
    %v193 = vsel %vm136, %v189, -inf
    %194 = vmax.xlane.f32.xlu0 %v193
    %v195 = vpop.xlane.xlu0 %194
    %v196 = vsub.f32 %v188, %v192
    %v197 = vsub.f32 %v189, %v195
    %v198 = vmul.f32 %v196, 1.442695
    %v199 = vpow.pop %v198
    %v200 = vmul.f32 %v197, 1.442695
    %v201 = vpow.pop %v200
    %v202 = vsel %vm136, %v199, 0.0
    %203 = vadd.xlane.f32.xlu0 %v202
    %v204 = vpop.xlane.xlu0 %203
    %v205 = vsel %vm136, %v201, 0.0
    %206 = vadd.xlane.f32.xlu0 %v205
    %v207 = vpop.xlane.xlu0 %206
    %v208 = vrcp.pop %v204
    %v209 = vrcp.pop %v207
    %v210 = vmul.f32 %v199, %v208
    %v211 = vmul.f32 %v201, %v209
    %212 = vst.msk [vmem:[#allocation8] sm:$0xff] %vm136, %v210
    %213 = vst.msk [vmem:[#allocation8 + $0x8] sm:$0xff] %vm136, %v211
    %v214 = vpack.c.bf16 %v210, %v210
    %v215 = vpack.c.bf16 %v211, %v211
    %216 = vrot.lane.b32.xlu0 %v133, 64
    %v217 = vpop.permute.xlu0 %216
    %v219 = vsel %vm136, %v214, 0
    %vm221 = vcmask 1043456
    %v223 = vsel %vm221, %v217, 0
    %225 = vmatpush.bf16.msra.mxu0 0
    %226 = vmatpush.bf16.msra.mxu0 0
    %227 = vmatpush.bf16.msra.mxu0 0
    %228 = vmatpush.bf16.msra.mxu0 0
    %229 = vmatpush.bf16.msra.mxu0 0
    %230 = vmatpush.bf16.msra.mxu0 0
    %231 = vmatpush.bf16.msra.mxu0 0
    %232 = vmatpush.bf16.msra.mxu0 %v223
    %233 = vmatmul.bf16.gmra.mxu0 %v219
    %v234 = vpop.f32.mrf.mxu0
    %v235 = vadd.f32 0.0, %v234
    %v236 = vpop.f32.mrf.mxu0
    %237 = vdwg.mxu0
    %238 = vrot.lane.b32.xlu0 %v158, 64
    %v239 = vpop.permute.xlu0 %238
    %v241 = vsel %vm136, %v215, 0
    %v244 = vsel %vm221, %v239, 0
    %246 = vmatpush.bf16.msra.mxu0 0
    %247 = vmatpush.bf16.msra.mxu0 0
    %248 = vmatpush.bf16.msra.mxu0 0
    %249 = vmatpush.bf16.msra.mxu0 0
    %250 = vmatpush.bf16.msra.mxu0 0
    %251 = vmatpush.bf16.msra.mxu0 0
    %252 = vmatpush.bf16.msra.mxu0 0
    %253 = vmatpush.bf16.msra.mxu0 %v244
    %254 = vmatmul.bf16.gmra.mxu0 %v241
    %v255 = vpop.f32.mrf.mxu0
    %v256 = vadd.f32 0.0, %v255
    %v257 = vpop.f32.mrf.mxu0
    %258 = vdwg.mxu0
    %v259 = vpack.c.bf16 %v256, %v235
    %v260 = vld [vmem:[%s4] sm:$0xf]
    %261 = vrot.lane.b32.xlu0 %v133, 120
    %v262 = vpop.permute.xlu0 %261
    %263 = vrot.lane.b32.xlu0 %v133, 88
    %v264 = vpop.permute.xlu0 %263
    %v266 = vsel %vm136, %v262, 0
    %v269 = vsel %vm136, %v264, 0
    %271 = vmatpush.bf16.xpose.msra.mxu0 0
    %272 = vmatpush.bf16.xpose.msra.mxu0 0
    %273 = vmatpush.bf16.xpose.msra.mxu0 0
    %274 = vmatpush.bf16.xpose.msra.mxu0 0
    %275 = vmatpush.bf16.xpose.msra.mxu0 0
    %276 = vmatpush.bf16.xpose.msra.mxu0 0
    %277 = vmatpush.bf16.xpose.msra.mxu0 0
    %278 = vmatpush.bf16.xpose.msra.mxu0 %v269
    %279 = vmatmul.bf16.gmra.mxu0 %v266
    %v280 = vpop.f32.mrf.mxu0
    %v281 = vadd.f32 0.0, %v280
    %v282 = vpop.f32.mrf.mxu0
    %283 = vdwg.mxu0
    %284 = vrot.lane.b32.xlu0 %v158, 120
    %v285 = vpop.permute.xlu0 %284
    %286 = vrot.lane.b32.xlu0 %v158, 88
    %v287 = vpop.permute.xlu0 %286
    %v289 = vsel %vm136, %v285, 0
    %v292 = vsel %vm136, %v287, 0
    %294 = vmatpush.bf16.xpose.msra.mxu0 0
    %295 = vmatpush.bf16.xpose.msra.mxu0 0
    %296 = vmatpush.bf16.xpose.msra.mxu0 0
    %297 = vmatpush.bf16.xpose.msra.mxu0 0
    %298 = vmatpush.bf16.xpose.msra.mxu0 0
    %299 = vmatpush.bf16.xpose.msra.mxu0 0
    %300 = vmatpush.bf16.xpose.msra.mxu0 0
    %301 = vmatpush.bf16.xpose.msra.mxu0 %v292
    %302 = vmatmul.bf16.gmra.mxu0 %v289
    %v303 = vpop.f32.mrf.mxu0
    %v304 = vadd.f32 0.0, %v303
    %v305 = vpop.f32.mrf.mxu0
    %306 = vdwg.mxu0
    %v307 = vmul.f32 %v281, 0.35355338
    %v308 = vmul.f32 %v304, 0.35355338
    %v309 = vsel %vm186, -1e+10, %v307
    %v310 = vsel %vm187, -1e+10, %v308
    %v311 = vsel %vm136, %v309, -inf
    %312 = vmax.xlane.f32.xlu0 %v311
    %v313 = vpop.xlane.xlu0 %312
    %v314 = vsel %vm136, %v310, -inf
    %315 = vmax.xlane.f32.xlu0 %v314
    %v316 = vpop.xlane.xlu0 %315
    %v317 = vsub.f32 %v309, %v313
    %v318 = vsub.f32 %v310, %v316
    %v319 = vmul.f32 %v317, 1.442695
    %v320 = vpow.pop %v319
    %v321 = vmul.f32 %v318, 1.442695
    %v322 = vpow.pop %v321
    %v323 = vsel %vm136, %v320, 0.0
    %324 = vadd.xlane.f32.xlu0 %v323
    %v325 = vpop.xlane.xlu0 %324
    %v326 = vsel %vm136, %v322, 0.0
    %327 = vadd.xlane.f32.xlu0 %v326
    %v328 = vpop.xlane.xlu0 %327
    %v329 = vrcp.pop %v325
    %v330 = vrcp.pop %v328
    %v331 = vmul.f32 %v320, %v329
    %v332 = vmul.f32 %v322, %v330
    %s333 = scalar_lea.vmem [#allocation8], 16
    %334 = vst.msk [vmem:[%s333] sm:$0xff] %vm136, %v331
    %335 = vst.msk [vmem:[%s333 + $0x8] sm:$0xff] %vm136, %v332
    %v336 = vpack.c.bf16 %v331, %v331
    %v337 = vpack.c.bf16 %v332, %v332
    %338 = vrot.lane.b32.xlu0 %v133, 56
    %v339 = vpop.permute.xlu0 %338
    %v341 = vsel %vm136, %v336, 0
    %v344 = vsel %vm221, %v339, 0
    %346 = vmatpush.bf16.msra.mxu0 0
    %347 = vmatpush.bf16.msra.mxu0 0
    %348 = vmatpush.bf16.msra.mxu0 0
    %349 = vmatpush.bf16.msra.mxu0 0
    %350 = vmatpush.bf16.msra.mxu0 0
    %351 = vmatpush.bf16.msra.mxu0 0
    %352 = vmatpush.bf16.msra.mxu0 0
    %353 = vmatpush.bf16.msra.mxu0 %v344
    %354 = vmatmul.bf16.gmra.mxu0 %v341
    %v355 = vpop.f32.mrf.mxu0
    %v356 = vadd.f32 0.0, %v355
    %v357 = vpop.f32.mrf.mxu0
    %358 = vdwg.mxu0
    %359 = vrot.lane.b32.xlu0 %v158, 56
    %v360 = vpop.permute.xlu0 %359
    %v362 = vsel %vm136, %v337, 0
    %v365 = vsel %vm221, %v360, 0
    %367 = vmatpush.bf16.msra.mxu0 0
    %368 = vmatpush.bf16.msra.mxu0 0
    %369 = vmatpush.bf16.msra.mxu0 0
    %370 = vmatpush.bf16.msra.mxu0 0
    %371 = vmatpush.bf16.msra.mxu0 0
    %372 = vmatpush.bf16.msra.mxu0 0
    %373 = vmatpush.bf16.msra.mxu0 0
    %374 = vmatpush.bf16.msra.mxu0 %v365
    %375 = vmatmul.bf16.gmra.mxu0 %v362
    %v376 = vpop.f32.mrf.mxu0
    %v377 = vadd.f32 0.0, %v376
    %v378 = vpop.f32.mrf.mxu0
    %379 = vdwg.mxu0
    %v380 = vpack.c.bf16 %v377, %v356
    %s381 = scalar_lea.vmem %s4, 4
    %v382 = vld [vmem:[%s381] sm:$0xf]
    %v384 = vsel %vm136, %v380, 0
    %v387 = vsel %vm221, %v382, 0
    %389 = vmatpush.bf16.msra.mxu0 0
    %390 = vmatpush.bf16.msra.mxu0 0
    %391 = vmatpush.bf16.msra.mxu0 0
    %392 = vmatpush.bf16.msra.mxu0 0
    %393 = vmatpush.bf16.msra.mxu0 0
    %394 = vmatpush.bf16.msra.mxu0 0
    %395 = vmatpush.bf16.msra.mxu0 0
    %396 = vmatpush.bf16.msra.mxu0 %v387
    %397 = vmatmul.bf16.gmra.mxu0 %v384
    %v398 = vpop.f32.mrf.mxu0
    %v399 = vadd.f32 0.0, %v398
    %v400 = vpop.f32.mrf.mxu0
    %v401 = vadd.f32 0.0, %v400
    %402 = vdwg.mxu0
    %v404 = vsel %vm136, %v259, 0
    %v407 = vsel %vm221, %v260, 0
    %409 = vmatpush.bf16.msra.mxu0 0
    %410 = vmatpush.bf16.msra.mxu0 0
    %411 = vmatpush.bf16.msra.mxu0 0
    %412 = vmatpush.bf16.msra.mxu0 0
    %413 = vmatpush.bf16.msra.mxu0 0
    %414 = vmatpush.bf16.msra.mxu0 0
    %415 = vmatpush.bf16.msra.mxu0 0
    %416 = vmatpush.bf16.msra.mxu0 %v407
    %417 = vmatmul.bf16.gmra.mxu0 %v404
    %v418 = vpop.f32.mrf.mxu0
    %v419 = vadd.f32 %v399, %v418
    %v420 = vpop.f32.mrf.mxu0
    %v421 = vadd.f32 %v401, %v420
    %422 = vdwg.mxu0
    %423 = vrot.lane.b32.xlu0 %v133, 112
    %v424 = vpop.permute.xlu0 %423
    %425 = vrot.lane.b32.xlu0 %v133, 80
    %v426 = vpop.permute.xlu0 %425
    %v428 = vsel %vm136, %v424, 0
    %v431 = vsel %vm136, %v426, 0
    %433 = vmatpush.bf16.xpose.msra.mxu0 0
    %434 = vmatpush.bf16.xpose.msra.mxu0 0
    %435 = vmatpush.bf16.xpose.msra.mxu0 0
    %436 = vmatpush.bf16.xpose.msra.mxu0 0
    %437 = vmatpush.bf16.xpose.msra.mxu0 0
    %438 = vmatpush.bf16.xpose.msra.mxu0 0
    %439 = vmatpush.bf16.xpose.msra.mxu0 0
    %440 = vmatpush.bf16.xpose.msra.mxu0 %v431
    %441 = vmatmul.bf16.gmra.mxu0 %v428
    %v442 = vpop.f32.mrf.mxu0
    %v443 = vadd.f32 0.0, %v442
    %v444 = vpop.f32.mrf.mxu0
    %445 = vdwg.mxu0
    %446 = vrot.lane.b32.xlu0 %v158, 112
    %v447 = vpop.permute.xlu0 %446
    %448 = vrot.lane.b32.xlu0 %v158, 80
    %v449 = vpop.permute.xlu0 %448
    %v451 = vsel %vm136, %v447, 0
    %v454 = vsel %vm136, %v449, 0
    %456 = vmatpush.bf16.xpose.msra.mxu0 0
    %457 = vmatpush.bf16.xpose.msra.mxu0 0
    %458 = vmatpush.bf16.xpose.msra.mxu0 0
    %459 = vmatpush.bf16.xpose.msra.mxu0 0
    %460 = vmatpush.bf16.xpose.msra.mxu0 0
    %461 = vmatpush.bf16.xpose.msra.mxu0 0
    %462 = vmatpush.bf16.xpose.msra.mxu0 0
    %463 = vmatpush.bf16.xpose.msra.mxu0 %v454
    %464 = vmatmul.bf16.gmra.mxu0 %v451
    %v465 = vpop.f32.mrf.mxu0
    %v466 = vadd.f32 0.0, %v465
    %v467 = vpop.f32.mrf.mxu0
    %468 = vdwg.mxu0
    %v469 = vmul.f32 %v443, 0.35355338
    %v470 = vmul.f32 %v466, 0.35355338
    %v471 = vsel %vm186, -1e+10, %v469
    %v472 = vsel %vm187, -1e+10, %v470
    %v473 = vsel %vm136, %v471, -inf
    %474 = vmax.xlane.f32.xlu0 %v473
    %v475 = vpop.xlane.xlu0 %474
    %v476 = vsel %vm136, %v472, -inf
    %477 = vmax.xlane.f32.xlu0 %v476
    %v478 = vpop.xlane.xlu0 %477
    %v479 = vsub.f32 %v471, %v475
    %v480 = vsub.f32 %v472, %v478
    %v481 = vmul.f32 %v479, 1.442695
    %v482 = vpow.pop %v481
    %v483 = vmul.f32 %v480, 1.442695
    %v484 = vpow.pop %v483
    %v485 = vsel %vm136, %v482, 0.0
    %486 = vadd.xlane.f32.xlu0 %v485
    %v487 = vpop.xlane.xlu0 %486
    %v488 = vsel %vm136, %v484, 0.0
    %489 = vadd.xlane.f32.xlu0 %v488
    %v490 = vpop.xlane.xlu0 %489
    %v491 = vrcp.pop %v487
    %v492 = vrcp.pop %v490
    %v493 = vmul.f32 %v482, %v491
    %v494 = vmul.f32 %v484, %v492
    %s495 = scalar_lea.vmem [#allocation8], 32
    %496 = vst.msk [vmem:[%s495] sm:$0xff] %vm136, %v493
    %497 = vst.msk [vmem:[%s495 + $0x8] sm:$0xff] %vm136, %v494
    %v498 = vpack.c.bf16 %v493, %v493
    %v499 = vpack.c.bf16 %v494, %v494
    %500 = vrot.lane.b32.xlu0 %v133, 48
    %v501 = vpop.permute.xlu0 %500
    %v503 = vsel %vm136, %v498, 0
    %v506 = vsel %vm221, %v501, 0
    %508 = vmatpush.bf16.msra.mxu0 0
    %509 = vmatpush.bf16.msra.mxu0 0
    %510 = vmatpush.bf16.msra.mxu0 0
    %511 = vmatpush.bf16.msra.mxu0 0
    %512 = vmatpush.bf16.msra.mxu0 0
    %513 = vmatpush.bf16.msra.mxu0 0
    %514 = vmatpush.bf16.msra.mxu0 0
    %515 = vmatpush.bf16.msra.mxu0 %v506
    %516 = vmatmul.bf16.gmra.mxu0 %v503
    %v517 = vpop.f32.mrf.mxu0
    %v518 = vadd.f32 0.0, %v517
    %v519 = vpop.f32.mrf.mxu0
    %520 = vdwg.mxu0
    %521 = vrot.lane.b32.xlu0 %v158, 48
    %v522 = vpop.permute.xlu0 %521
    %v524 = vsel %vm136, %v499, 0
    %v527 = vsel %vm221, %v522, 0
    %529 = vmatpush.bf16.msra.mxu0 0
    %530 = vmatpush.bf16.msra.mxu0 0
    %531 = vmatpush.bf16.msra.mxu0 0
    %532 = vmatpush.bf16.msra.mxu0 0
    %533 = vmatpush.bf16.msra.mxu0 0
    %534 = vmatpush.bf16.msra.mxu0 0
    %535 = vmatpush.bf16.msra.mxu0 0
    %536 = vmatpush.bf16.msra.mxu0 %v527
    %537 = vmatmul.bf16.gmra.mxu0 %v524
    %v538 = vpop.f32.mrf.mxu0
    %v539 = vadd.f32 0.0, %v538
    %v540 = vpop.f32.mrf.mxu0
    %541 = vdwg.mxu0
    %v542 = vpack.c.bf16 %v539, %v518
    %s543 = scalar_lea.vmem %s4, 8
    %v544 = vld [vmem:[%s543] sm:$0xf]
    %v546 = vsel %vm136, %v542, 0
    %v549 = vsel %vm221, %v544, 0
    %551 = vmatpush.bf16.msra.mxu0 0
    %552 = vmatpush.bf16.msra.mxu0 0
    %553 = vmatpush.bf16.msra.mxu0 0
    %554 = vmatpush.bf16.msra.mxu0 0
    %555 = vmatpush.bf16.msra.mxu0 0
    %556 = vmatpush.bf16.msra.mxu0 0
    %557 = vmatpush.bf16.msra.mxu0 0
    %558 = vmatpush.bf16.msra.mxu0 %v549
    %559 = vmatmul.bf16.gmra.mxu0 %v546
    %v560 = vpop.f32.mrf.mxu0
    %v561 = vadd.f32 0.0, %v560
    %v562 = vpop.f32.mrf.mxu0
    %v563 = vadd.f32 0.0, %v562
    %564 = vdwg.mxu0
    %v565 = vadd.f32 %v419, %v561
    %v566 = vadd.f32 %v421, %v563
    %567 = vrot.lane.b32.xlu0 %v133, 104
    %v568 = vpop.permute.xlu0 %567
    %569 = vrot.lane.b32.xlu0 %v133, 72
    %v570 = vpop.permute.xlu0 %569
    %v572 = vsel %vm136, %v568, 0
    %v575 = vsel %vm136, %v570, 0
    %577 = vmatpush.bf16.xpose.msra.mxu0 0
    %578 = vmatpush.bf16.xpose.msra.mxu0 0
    %579 = vmatpush.bf16.xpose.msra.mxu0 0
    %580 = vmatpush.bf16.xpose.msra.mxu0 0
    %581 = vmatpush.bf16.xpose.msra.mxu0 0
    %582 = vmatpush.bf16.xpose.msra.mxu0 0
    %583 = vmatpush.bf16.xpose.msra.mxu0 0
    %584 = vmatpush.bf16.xpose.msra.mxu0 %v575
    %585 = vmatmul.bf16.gmra.mxu0 %v572
    %v586 = vpop.f32.mrf.mxu0
    %v587 = vadd.f32 0.0, %v586
    %v588 = vpop.f32.mrf.mxu0
    %589 = vdwg.mxu0
    %590 = vrot.lane.b32.xlu0 %v158, 104
    %v591 = vpop.permute.xlu0 %590
    %592 = vrot.lane.b32.xlu0 %v158, 72
    %v593 = vpop.permute.xlu0 %592
    %v595 = vsel %vm136, %v591, 0
    %v598 = vsel %vm136, %v593, 0
    %600 = vmatpush.bf16.xpose.msra.mxu0 0
    %601 = vmatpush.bf16.xpose.msra.mxu0 0
    %602 = vmatpush.bf16.xpose.msra.mxu0 0
    %603 = vmatpush.bf16.xpose.msra.mxu0 0
    %604 = vmatpush.bf16.xpose.msra.mxu0 0
    %605 = vmatpush.bf16.xpose.msra.mxu0 0
    %606 = vmatpush.bf16.xpose.msra.mxu0 0
    %607 = vmatpush.bf16.xpose.msra.mxu0 %v598
    %608 = vmatmul.bf16.gmra.mxu0 %v595
    %v609 = vpop.f32.mrf.mxu0
    %v610 = vadd.f32 0.0, %v609
    %v611 = vpop.f32.mrf.mxu0
    %612 = vdwg.mxu0
    %v613 = vmul.f32 %v587, 0.35355338
    %v614 = vmul.f32 %v610, 0.35355338
    %v615 = vsel %vm186, -1e+10, %v613
    %v616 = vsel %vm187, -1e+10, %v614
    %v617 = vsel %vm136, %v615, -inf
    %618 = vmax.xlane.f32.xlu0 %v617
    %v619 = vpop.xlane.xlu0 %618
    %v620 = vsel %vm136, %v616, -inf
    %621 = vmax.xlane.f32.xlu0 %v620
    %v622 = vpop.xlane.xlu0 %621
    %v623 = vsub.f32 %v615, %v619
    %v624 = vsub.f32 %v616, %v622
    %v625 = vmul.f32 %v623, 1.442695
    %v626 = vpow.pop %v625
    %v627 = vmul.f32 %v624, 1.442695
    %v628 = vpow.pop %v627
    %v629 = vsel %vm136, %v626, 0.0
    %630 = vadd.xlane.f32.xlu0 %v629
    %v631 = vpop.xlane.xlu0 %630
    %v632 = vsel %vm136, %v628, 0.0
    %633 = vadd.xlane.f32.xlu0 %v632
    %v634 = vpop.xlane.xlu0 %633
    %v635 = vrcp.pop %v631
    %v636 = vrcp.pop %v634
    %v637 = vmul.f32 %v626, %v635
    %v638 = vmul.f32 %v628, %v636
    %s639 = scalar_lea.vmem [#allocation8], 48
    %640 = vst.msk [vmem:[%s639] sm:$0xff] %vm136, %v637
    %641 = vst.msk [vmem:[%s639 + $0x8] sm:$0xff] %vm136, %v638
    %v642 = vpack.c.bf16 %v637, %v637
    %v643 = vpack.c.bf16 %v638, %v638
    %644 = vrot.lane.b32.xlu0 %v133, 40
    %v645 = vpop.permute.xlu0 %644
    %v647 = vsel %vm136, %v642, 0
    %v650 = vsel %vm221, %v645, 0
    %652 = vmatpush.bf16.msra.mxu0 0
    %653 = vmatpush.bf16.msra.mxu0 0
    %654 = vmatpush.bf16.msra.mxu0 0
    %655 = vmatpush.bf16.msra.mxu0 0
    %656 = vmatpush.bf16.msra.mxu0 0
    %657 = vmatpush.bf16.msra.mxu0 0
    %658 = vmatpush.bf16.msra.mxu0 0
    %659 = vmatpush.bf16.msra.mxu0 %v650
    %660 = vmatmul.bf16.gmra.mxu0 %v647
    %v661 = vpop.f32.mrf.mxu0
    %v662 = vadd.f32 0.0, %v661
    %v663 = vpop.f32.mrf.mxu0
    %664 = vdwg.mxu0
    %665 = vrot.lane.b32.xlu0 %v158, 40
    %v666 = vpop.permute.xlu0 %665
    %v668 = vsel %vm136, %v643, 0
    %v671 = vsel %vm221, %v666, 0
    %673 = vmatpush.bf16.msra.mxu0 0
    %674 = vmatpush.bf16.msra.mxu0 0
    %675 = vmatpush.bf16.msra.mxu0 0
    %676 = vmatpush.bf16.msra.mxu0 0
    %677 = vmatpush.bf16.msra.mxu0 0
    %678 = vmatpush.bf16.msra.mxu0 0
    %679 = vmatpush.bf16.msra.mxu0 0
    %680 = vmatpush.bf16.msra.mxu0 %v671
    %681 = vmatmul.bf16.gmra.mxu0 %v668
    %v682 = vpop.f32.mrf.mxu0
    %v683 = vadd.f32 0.0, %v682
    %v684 = vpop.f32.mrf.mxu0
    %685 = vdwg.mxu0
    %v686 = vpack.c.bf16 %v683, %v662
    %s687 = scalar_lea.vmem %s4, 12
    %v688 = vld [vmem:[%s687] sm:$0xf]
    %v690 = vsel %vm136, %v686, 0
    %v693 = vsel %vm221, %v688, 0
    %695 = vmatpush.bf16.msra.mxu0 0
    %696 = vmatpush.bf16.msra.mxu0 0
    %697 = vmatpush.bf16.msra.mxu0 0
    %698 = vmatpush.bf16.msra.mxu0 0
    %699 = vmatpush.bf16.msra.mxu0 0
    %700 = vmatpush.bf16.msra.mxu0 0
    %701 = vmatpush.bf16.msra.mxu0 0
    %702 = vmatpush.bf16.msra.mxu0 %v693
    %703 = vmatmul.bf16.gmra.mxu0 %v690
    %v704 = vpop.f32.mrf.mxu0
    %v705 = vadd.f32 0.0, %v704
    %v706 = vpop.f32.mrf.mxu0
    %v707 = vadd.f32 0.0, %v706
    %708 = vdwg.mxu0
    %v709 = vadd.f32 %v565, %v705
    %v710 = vadd.f32 %v566, %v707
    %v711 = vld [vmem:[%s5] sm:$0x1]
    %v713 = vperm.slane %v711, 0
    %v715 = vadd.f32 %v709, %v713
    %v716 = vadd.f32 %v710, %v713
    %v717 = vadd.f32 %v84, %v715
    %v718 = vadd.f32 %v85, %v716
    %v719 = vsel %vm111, %v717, 0.0
    %720 = vadd.xlane.f32.xlu0 %v719
    %v721 = vpop.xlane.xlu0 %720
    %v722 = vsel %vm111, %v718, 0.0
    %723 = vadd.xlane.f32.xlu0 %v722
    %v724 = vpop.xlane.xlu0 %723
    %v725 = vmul.f32 %v721, 0.03125
    %v726 = vmul.f32 %v724, 0.03125
    %v727 = vsub.f32 %v717, %v725
    %v728 = vsub.f32 %v718, %v726
    %v729 = vmul.f32 %v727, %v727
    %v730 = vmul.f32 %v728, %v728
    %v731 = vsel %vm111, %v729, 0.0
    %732 = vadd.xlane.f32.xlu0 %v731
    %v733 = vpop.xlane.xlu0 %732
    %v734 = vsel %vm111, %v730, 0.0
    %735 = vadd.xlane.f32.xlu0 %v734
    %v736 = vpop.xlane.xlu0 %735
    %v737 = vmul.f32 %v733, 0.03125
    %v738 = vmul.f32 %v736, 0.03125
    %v739 = vadd.f32 %v737, 1e-05
    %v740 = vadd.f32 %v738, 1e-05
    %v741 = vrsqrt.pop %v739
    %v742 = vmul.f32 %v741, %v739
    %v743 = vmul.f32 %v742, %v741
    %v744 = vmul.f32 0.5, %v743
    %v745 = vsub.f32 1.5, %v744
    %v746 = vmul.f32 %v741, %v745
    %vm747 = vweird.f32 %v739
    %vm748 = vweird.f32 %v741
    %vm749 = vmor %vm747, %vm748
    %v750 = vsel %vm749, %v741, %v746
    %v751 = vrsqrt.pop %v740
    %v752 = vmul.f32 %v751, %v740
    %v753 = vmul.f32 %v752, %v751
    %v754 = vmul.f32 0.5, %v753
    %v755 = vsub.f32 1.5, %v754
    %v756 = vmul.f32 %v751, %v755
    %vm757 = vweird.f32 %v740
    %vm758 = vweird.f32 %v751
    %vm759 = vmor %vm757, %vm758
    %v760 = vsel %vm759, %v751, %v756
    %v761 = vmul.f32 %v727, %v750
    %v762 = vmul.f32 %v728, %v760
    %v763 = vld [vmem:[%s6] sm:$0x1]
    %v765 = vperm.slane %v763, 0
    %v767 = vmul.f32 %v761, %v765
    %v768 = vmul.f32 %v762, %v765
    %v769 = vld [vmem:[%s7] sm:$0x1]
    %v771 = vperm.slane %v769, 0
    %v773 = vadd.f32 %v767, %v771
    %v774 = vadd.f32 %v768, %v771
    %v775 = vpack.c.bf16 %v774, %v773
    %v776 = vld [vmem:[#allocation5] sm:$0xf]
    %v777 = vld [vmem:[#allocation5 + $0x4] sm:$0xf]
    %v778 = vld [vmem:[#allocation5 + $0x8] sm:$0xf]
    %v779 = vld [vmem:[#allocation5 + $0xc] sm:$0xf]
    %v780 = vld [vmem:[%s9] sm:$0x1]
    %v782 = vperm.slane %v780, 0
    %v788 = vunpack.c.l.b16 %v776
    %v789 = vunpack.c.l.b16 %v777
    %v790 = vunpack.c.l.b16 %v778
    %v791 = vunpack.c.l.b16 %v779
    %v792 = vpack.c.b16 %v789, %v788
    %v793 = vpack.c.b16 %v791, %v790
    %v797 = vsel %vm111, %v775, 0
    %799 = vmatpush.bf16.msra.mxu0 0
    %800 = vmatpush.bf16.msra.mxu0 0
    %801 = vmatpush.bf16.msra.mxu0 0
    %802 = vmatpush.bf16.msra.mxu0 0
    %803 = vmatpush.bf16.msra.mxu0 0
    %804 = vmatpush.bf16.msra.mxu0 0
    %805 = vmatpush.bf16.msra.mxu0 %v793
    %806 = vmatpush.bf16.msra.mxu0 %v792
    %807 = vmatmul.bf16.gmra.mxu0 %v797
    %v808 = vpop.f32.mrf.mxu0
    %v809 = vadd.f32 %v782, %v808
    %v810 = vpop.f32.mrf.mxu0
    %v811 = vadd.f32 %v782, %v810
    %812 = vdwg.mxu0
    %v813 = vmax.f32 %v809, 0.0
    %v814 = vmax.f32 %v811, 0.0
    %v815 = vpack.c.bf16 %v814, %v813
    %v816 = vld [vmem:[%s10] sm:$0xf]
    %v817 = vld [vmem:[%s10 + $0x4] sm:$0xf]
    %v818 = vld [vmem:[%s10 + $0x8] sm:$0xf]
    %v819 = vld [vmem:[%s10 + $0xc] sm:$0xf]
    %v820 = vld [vmem:[%s10 + $0x10] sm:$0xf]
    %v821 = vld [vmem:[%s10 + $0x14] sm:$0xf]
    %v822 = vld [vmem:[%s10 + $0x18] sm:$0xf]
    %v823 = vld [vmem:[%s10 + $0x1c] sm:$0xf]
    %v824 = vld [vmem:[%s11] sm:$0x1]
    %v826 = vperm.slane %v824, 0
    %v836 = vunpack.c.l.b16 %v816
    %v837 = vunpack.c.l.b16 %v817
    %v838 = vunpack.c.l.b16 %v818
    %v839 = vunpack.c.l.b16 %v819
    %v840 = vunpack.c.l.b16 %v820
    %v841 = vunpack.c.l.b16 %v821
    %v842 = vunpack.c.l.b16 %v822
    %v843 = vunpack.c.l.b16 %v823
    %v844 = vpack.c.b16 %v837, %v836
    %v845 = vpack.c.b16 %v839, %v838
    %v846 = vpack.c.b16 %v841, %v840
    %v847 = vpack.c.b16 %v843, %v842
    %vm852 = vcmask 523264
    %v854 = vsel %vm852, %v815, 0
    %856 = vmatpush.bf16.msra.mxu0 0
    %857 = vmatpush.bf16.msra.mxu0 0
    %858 = vmatpush.bf16.msra.mxu0 0
    %859 = vmatpush.bf16.msra.mxu0 0
    %860 = vmatpush.bf16.msra.mxu0 %v847
    %861 = vmatpush.bf16.msra.mxu0 %v846
    %862 = vmatpush.bf16.msra.mxu0 %v845
    %863 = vmatpush.bf16.msra.mxu0 %v844
    %864 = vmatmul.bf16.gmra.mxu0 %v854
    %v865 = vpop.f32.mrf.mxu0
    %v866 = vadd.f32 %v826, %v865
    %v867 = vpop.f32.mrf.mxu0
    %v868 = vadd.f32 %v826, %v867
    %869 = vdwg.mxu0
    %v870 = vadd.f32 %v773, %v866
    %v871 = vadd.f32 %v774, %v868
    %v872 = vsel %vm111, %v870, 0.0
    %873 = vadd.xlane.f32.xlu0 %v872
    %v874 = vpop.xlane.xlu0 %873
    %v875 = vsel %vm111, %v871, 0.0
    %876 = vadd.xlane.f32.xlu0 %v875
    %v877 = vpop.xlane.xlu0 %876
    %v878 = vmul.f32 %v874, 0.03125
    %v879 = vmul.f32 %v877, 0.03125
    %v880 = vsub.f32 %v870, %v878
    %v881 = vsub.f32 %v871, %v879
    %v882 = vmul.f32 %v880, %v880
    %v883 = vmul.f32 %v881, %v881
    %v884 = vsel %vm111, %v882, 0.0
    %885 = vadd.xlane.f32.xlu0 %v884
    %v886 = vpop.xlane.xlu0 %885
    %v887 = vsel %vm111, %v883, 0.0
    %888 = vadd.xlane.f32.xlu0 %v887
    %v889 = vpop.xlane.xlu0 %888
    %v890 = vmul.f32 %v886, 0.03125
    %v891 = vmul.f32 %v889, 0.03125
    %v892 = vadd.f32 %v890, 1e-05
    %v893 = vadd.f32 %v891, 1e-05
    %v894 = vrsqrt.pop %v892
    %v895 = vmul.f32 %v894, %v892
    %v896 = vmul.f32 %v895, %v894
    %v897 = vmul.f32 0.5, %v896
    %v898 = vsub.f32 1.5, %v897
    %v899 = vmul.f32 %v894, %v898
    %vm900 = vweird.f32 %v892
    %vm901 = vweird.f32 %v894
    %vm902 = vmor %vm900, %vm901
    %v903 = vsel %vm902, %v894, %v899
    %v904 = vrsqrt.pop %v893
    %v905 = vmul.f32 %v904, %v893
    %v906 = vmul.f32 %v905, %v904
    %v907 = vmul.f32 0.5, %v906
    %v908 = vsub.f32 1.5, %v907
    %v909 = vmul.f32 %v904, %v908
    %vm910 = vweird.f32 %v893
    %vm911 = vweird.f32 %v904
    %vm912 = vmor %vm910, %vm911
    %v913 = vsel %vm912, %v904, %v909
    %v914 = vmul.f32 %v880, %v903
    %v915 = vmul.f32 %v881, %v913
    %v916 = vld [vmem:[%s12] sm:$0x1]
    %v918 = vperm.slane %v916, 0
    %v920 = vmul.f32 %v914, %v918
    %v921 = vmul.f32 %v915, %v918
    %v922 = vld [vmem:[%s13] sm:$0x1]
    %v924 = vperm.slane %v922, 0
    %v926 = vadd.f32 %v920, %v924
    %v927 = vadd.f32 %v921, %v924
    %928 = vst.msk [vmem:[#allocation7] sm:$0xff] %vm111, %v926
    %929 = vst.msk [vmem:[#allocation7 + $0x8] sm:$0xff] %vm111, %v927
    // Predicated region
    $region66: #{tpu_custom_call.1} parent=1 // pred_check
      _
    $region67: #{tpu_custom_call.1} parent=1 // pred_check_branch
      %931 = sbr.rel (0) target = $region69
    $region68: #{tpu_custom_call.1} parent=1 // pred_region
      %933 = vsyncadd [#allocation4], 0
      %s934 = sshll.u32 [#allocation7], 4
      %s935 = int_to_ptr.vmem [resolvable:$true] %s934
      %s936 = sshll.u32 %s14, 4
      %s937 = int_to_ptr.hbm [resolvable:$true] %s936
      %942 = dma.vmem_to_hbm [thread:$0]  %s935, 256, %s937, [#allocation4], 128, 128, 8
    $region69: #{tpu_custom_call.1} parent=1 // pred_fallthru
      _
    // Predicated region
    $region70: #{tpu_custom_call.1} parent=1 // pred_check
      _
    $region71: #{tpu_custom_call.1} parent=1 // pred_check_branch
      %944 = sbr.rel (0) target = $region73
    $region72: #{tpu_custom_call.1} parent=1 // pred_region
      %946 = vsyncadd [#allocation9], 0
      %s947 = sshll.u32 [#allocation8], 4
      %s948 = int_to_ptr.vmem [resolvable:$true] %s947
      %s949 = sshll.u32 %s15, 4
      %s950 = int_to_ptr.hbm [resolvable:$true] %s949
      %955 = dma.vmem_to_hbm [thread:$0]  %s948, 1024, %s950, [#allocation9], 128, 128, 8
    $region73: #{tpu_custom_call.1} parent=1 // pred_fallthru
      _
    // Predicated region
    $region74: #{tpu_custom_call.1} parent=1 // pred_check
      _
    $region75: #{tpu_custom_call.1} parent=1 // pred_check_branch
      %957 = sbr.rel (0) target = $region77
    $region76: #{tpu_custom_call.1} parent=1 // pred_region
      %959 = dma.done [#allocation4], 256
    $region77: #{tpu_custom_call.1} parent=1 // pred_fallthru
      _
    // Predicated region
    $region78: #{tpu_custom_call.1} parent=1 // pred_check
      _
    $region79: #{tpu_custom_call.1} parent=1 // pred_check_branch
      %961 = sbr.rel (0) target = $region81
    $region80: #{tpu_custom_call.1} parent=1 // pred_region
      %963 = dma.done [#allocation9], 1024
    $region81: #{tpu_custom_call.1} parent=1 // pred_fallthru
      _
    %964 = vsyncpa [#allocation3], 1
    %965 = vsyncpa [#allocation6], 1
    %966 = vsyncpa [#allocation4], 1
    %967 = vsyncpa [#allocation9], 1

</llo_original>
